<compile_context>
chip_gen: v5e
topology: v5e:2x2
jax: 0.10.0
libtpu: 0.0.40
codegen_flags: <defaults>
</compile_context>

<pallas_src>
import jax
import jax.numpy as jnp
from jax.experimental import pallas as pl
from jax.experimental.pallas import tpu as pltpu

_BN_EPS = 1e-5
_VMEM_LIMIT = 32 * 1024 * 1024  # safe on v5e/v6e/v7x (<= half of v7x's 64 MiB)


# --------------------------------------------------------------------------
# Kernels
# --------------------------------------------------------------------------
def _conv1_stats_kernel(x_ref, w1_ref, h_ref, s_ref, ss_ref):
    """h = W1 @ x  (per (Cin, tile_m) block), accumulate sum / sumsq of h."""
    @pl.when(jnp.logical_and(pl.program_id(0) == 0, pl.program_id(1) == 0))
    def _():
        s_ref[...] = jnp.zeros_like(s_ref)
        ss_ref[...] = jnp.zeros_like(ss_ref)

    # K = Cin is tiny; the kernel is memory-bound so the MXU is idle anyway.
    h = jnp.dot(w1_ref[...], x_ref[...], preferred_element_type=jnp.float32)
    h_ref[...] = h
    s_ref[...] += jnp.sum(h, axis=-1, keepdims=True)
    ss_ref[...] += jnp.sum(h * h, axis=-1, keepdims=True)


def _bn1_relu_conv2_stats_kernel(h_ref, w2_ref, sc1_ref, sh1_ref,
                                 y_ref, s_ref, ss_ref):
    """Apply folded BN1 (scale/shift) + ReLU, y = W2 @ h, accumulate BN2 sums."""
    @pl.when(jnp.logical_and(pl.program_id(0) == 0, pl.program_id(1) == 0))
    def _():
        s_ref[...] = jnp.zeros_like(s_ref)
        ss_ref[...] = jnp.zeros_like(ss_ref)

    hn = jnp.maximum(h_ref[...] * sc1_ref[...] + sh1_ref[...], 0.0)
    y = jnp.dot(w2_ref[...], hn, preferred_element_type=jnp.float32)
    y_ref[...] = y
    s_ref[...] += jnp.sum(y, axis=-1, keepdims=True)
    ss_ref[...] += jnp.sum(y * y, axis=-1, keepdims=True)


def _bn2_apply_kernel(y_ref, sc2_ref, sh2_ref, o_ref):
    """Elementwise folded BN2: out = y * scale + shift (in place via aliasing)."""
    o_ref[...] = y_ref[...] * sc2_ref[...] + sh2_ref[...]


# --------------------------------------------------------------------------
# Wrapper
# --------------------------------------------------------------------------
def _pick_tile_m(hw):
    """Largest lane-dense (128-multiple) tile that exactly divides H*W."""
    if hw % 128 != 0:
        return hw  # full extent (always legal: block dim == array dim)
    for cand in (512, 384, 256, 128):
        if hw % cand == 0:
            return cand
    return 128


def _fold_bn(s, ss, gamma, beta, m_total):
    """Fold batch stats + affine into one per-channel scale/shift."""
    inv_m = 1.0 / m_total
    mean = s * inv_m
    var = jnp.maximum(ss * inv_m - mean * mean, 0.0)  # clamp f32 cancellation
    scale = gamma * jax.lax.rsqrt(var + _BN_EPS)
    shift = beta - mean * scale
    return scale, shift


def projection_conv_forward(x_nchw, params):
    """x_nchw: (N, Cin, H, W) f32 -> (N, out_dim, H, W) f32 (training-mode BN)."""
    n, c, hh, ww = x_nchw.shape
    hw = hh * ww
    m_total = n * hw

    # Free reshape (NCHW is already channel-major per image): (N, Cin, H*W).
    x3 = x_nchw.reshape(n, c, hw)

    w1 = params["w1"]          # (Hd, Cin)   -- PyTorch conv weight layout
    w2 = params["w2"]          # (Od, Hd)
    g1, be1 = params["g1"], params["be1"]    # (Hd, 1)
    g2, be2 = params["g2"], params["be2"]    # (Od, 1)
    hd = w1.shape[0]
    od = w2.shape[0]

    tile_m = _pick_tile_m(hw)
    num_mt = hw // tile_m
    grid = (n, num_mt)

    acc_params = pltpu.CompilerParams(
        dimension_semantics=("arbitrary", "arbitrary"),
        vmem_limit_bytes=_VMEM_LIMIT)
    par_params = pltpu.CompilerParams(
        dimension_semantics=("parallel", "parallel"),
        vmem_limit_bytes=_VMEM_LIMIT)

    # Block specs (transposed orientation: channels on sublanes, pixels on lanes)
    x_spec = pl.BlockSpec((None, c, tile_m), lambda i, j: (i, 0, j))
    h_spec = pl.BlockSpec((None, hd, tile_m), lambda i, j: (i, 0, j))
    y_spec = pl.BlockSpec((None, od, tile_m), lambda i, j: (i, 0, j))
    w1_spec = pl.BlockSpec((hd, c), lambda i, j: (0, 0))     # resident weights
    w2_spec = pl.BlockSpec((od, hd), lambda i, j: (0, 0))
    colh_spec = pl.BlockSpec((hd, 1), lambda i, j: (0, 0))   # resident accums
    colo_spec = pl.BlockSpec((od, 1), lambda i, j: (0, 0))

    # ---- Pass 1: conv1 (no bias; cancelled by BN1) + BN1 sum/sumsq ----
    h_raw, s1, ss1 = pl.pallas_call(
        _conv1_stats_kernel,
        grid=grid,
        in_specs=[x_spec, w1_spec],
        out_specs=(h_spec, colh_spec, colh_spec),
        out_shape=(jax.ShapeDtypeStruct((n, hd, hw), jnp.float32),
                   jax.ShapeDtypeStruct((hd, 1), jnp.float32),
                   jax.ShapeDtypeStruct((hd, 1), jnp.float32)),
        compiler_params=acc_params,
        cost_estimate=pl.CostEstimate(
            flops=2 * m_total * c * hd,
            transcendentals=0,
            bytes_accessed=4 * (m_total * c + c * hd + m_total * hd)),
    )(x3, w1)

    scale1, shift1 = _fold_bn(s1, ss1, g1, be1, m_total)

    # ---- Pass 2: folded BN1 + ReLU + conv2 (no bias) + BN2 sum/sumsq ----
    y_raw, s2, ss2 = pl.pallas_call(
        _bn1_relu_conv2_stats_kernel,
        grid=grid,
        in_specs=[h_spec, w2_spec, colh_spec, colh_spec],
        out_specs=(y_spec, colo_spec, colo_spec),
        out_shape=(jax.ShapeDtypeStruct((n, od, hw), jnp.float32),
                   jax.ShapeDtypeStruct((od, 1), jnp.float32),
                   jax.ShapeDtypeStruct((od, 1), jnp.float32)),
        compiler_params=acc_params,
        cost_estimate=pl.CostEstimate(
            flops=2 * m_total * hd * od + 4 * m_total * hd,
            transcendentals=0,
            bytes_accessed=4 * (m_total * hd + hd * od + m_total * od)),
    )(h_raw, w2, scale1, shift1)

    scale2, shift2 = _fold_bn(s2, ss2, g2, be2, m_total)

    # ---- Pass 3: folded BN2 applied in place (aliased output) ----
    out3 = pl.pallas_call(
        _bn2_apply_kernel,
        grid=grid,
        in_specs=[y_spec, colo_spec, colo_spec],
        out_specs=y_spec,
        out_shape=jax.ShapeDtypeStruct((n, od, hw), jnp.float32),
        input_output_aliases={0: 0},
        compiler_params=par_params,
        cost_estimate=pl.CostEstimate(
            flops=2 * m_total * od,
            transcendentals=0,
            bytes_accessed=8 * m_total * od),
    )(y_raw, scale2, shift2)

    # (N, Od, H*W) -> (N, Od, H, W): free reshape, already channel-major.
    return out3.reshape(n, od, hh, ww)


# --------------------------------------------------------------------------
# Params (PyTorch-equivalent shapes; conv weights kept in (O, Cin) layout)
# --------------------------------------------------------------------------
def init_params(key, in_dim, hidden_dim, out_dim):
    k1, k2, k3, k4 = jax.random.split(key, 4)
    return {
        # Conv2d weight (O, Cin, 1, 1) stored as (O, Cin).
        "w1": jax.random.normal(k1, (hidden_dim, in_dim), jnp.float32) * 0.05,
        # Biases are kept only for the reference check: training-mode BN
        # cancels them, so the Pallas path never reads them.
        "b1": jax.random.normal(k2, (hidden_dim, 1), jnp.float32) * 0.05,
        "g1": jnp.ones((hidden_dim, 1), jnp.float32),
        "be1": jnp.zeros((hidden_dim, 1), jnp.float32),
        "w2": jax.random.normal(k3, (out_dim, hidden_dim), jnp.float32) * 0.05,
        "b2": jax.random.normal(k4, (out_dim, 1), jnp.float32) * 0.05,
        "g2": jnp.ones((out_dim, 1), jnp.float32),
        "be2": jnp.zeros((out_dim, 1), jnp.float32),
    }


if __name__ == "__main__":
    key = jax.random.PRNGKey(0)
    kx, kp = jax.random.split(key)
    N, CIN, H, W = 2, 4, 16, 16
    HIDDEN, OUT = 32, 32

    x = jax.random.normal(kx, (N, CIN, H, W), jnp.float32)
    params = init_params(kp, CIN, HIDDEN, OUT)

    y = jax.jit(projection_conv_forward)(x, params)
    jax.block_until_ready(y)

    # -------- Pure-JAX reference: the exact PyTorch forward (with biases) ----
    w1, b1 = params["w1"], params["b1"]
    w2, b2 = params["w2"], params["b2"]
    g1, be1 = params["g1"], params["be1"]
    g2, be2 = params["g2"], params["be2"]

    def bn_train(t, gamma, beta):
        m = t.mean(axis=(0, 2, 3), keepdims=True)
        v = ((t - m) ** 2).mean(axis=(0, 2, 3), keepdims=True)
        return ((t - m) * jax.lax.rsqrt(v + _BN_EPS)
                * gamma.reshape(1, -1, 1, 1) + beta.reshape(1, -1, 1, 1))

    h = jnp.einsum("oc,nchw->nohw", w1, x) + b1.reshape(1, -1, 1, 1)
    h = jnp.maximum(bn_train(h, g1, be1), 0.0)
    yr = jnp.einsum("oc,nchw->nohw", w2, h) + b2.reshape(1, -1, 1, 1)
    yr = bn_train(yr, g2, be2)

    assert y.shape == (N, OUT, H, W), f"bad output shape {y.shape}"
    assert jnp.allclose(y, yr, atol=5e-4), "mismatch vs reference"

    print("KERNEL_OK")
</pallas_src>

<mosaic_0001>
module attributes {stable_mosaic.version = 11 : i64} {
  func.func @_bn1_relu_conv2_stats_kernel(%arg0: i32, %arg1: i32, %arg2: memref<1x32x256xf32, #tpu.memory_space<vmem>>, %arg3: memref<32x32xf32, #tpu.memory_space<vmem>>, %arg4: memref<32x1xf32, #tpu.memory_space<vmem>>, %arg5: memref<32x1xf32, #tpu.memory_space<vmem>>, %arg6: memref<1x32x256xf32, #tpu.memory_space<vmem>>, %arg7: memref<32x1xf32, #tpu.memory_space<vmem>>, %arg8: memref<32x1xf32, #tpu.memory_space<vmem>>) attributes {dimension_semantics = [#tpu.dimension_semantics<arbitrary>, #tpu.dimension_semantics<arbitrary>], iteration_bounds = array<i64: 2, 1>, scalar_prefetch = 0 : i64, scratch_operands = 0 : i64, tpu.core_type = #tpu.core_type<tc>, window_params = [{transform_indices = @transform_0, window_bounds = array<i64: 1, 32, 256>}, {pipeline_mode = #tpu.pipeline_mode<synchronous>, transform_indices = @transform_1, window_bounds = array<i64: 32, 32>}, {pipeline_mode = #tpu.pipeline_mode<synchronous>, transform_indices = @transform_2, window_bounds = array<i64: 32, 1>}, {pipeline_mode = #tpu.pipeline_mode<synchronous>, transform_indices = @transform_3, window_bounds = array<i64: 32, 1>}, {transform_indices = @transform_4, window_bounds = array<i64: 1, 32, 256>}, {pipeline_mode = #tpu.pipeline_mode<synchronous>, transform_indices = @transform_5, window_bounds = array<i64: 32, 1>}, {pipeline_mode = #tpu.pipeline_mode<synchronous>, transform_indices = @transform_6, window_bounds = array<i64: 32, 1>}]} {
    %c0_i32 = arith.constant 0 : i32
    %0 = arith.cmpi eq, %arg0, %c0_i32 : i32
    %c0_i32_0 = arith.constant 0 : i32
    %1 = arith.cmpi eq, %arg1, %c0_i32_0 : i32
    %2 = arith.andi %0, %1 : i1
    %3 = arith.extui %2 : i1 to i32
    %c0_i32_1 = arith.constant 0 : i32
    %4 = arith.cmpi ne, %3, %c0_i32_1 : i32
    scf.if %4 {
      %cst_24 = arith.constant 0.000000e+00 : f32
      %31 = vector.broadcast %cst_24 : f32 to vector<32x1xf32>
      %c0_25 = arith.constant 0 : index
      %c0_26 = arith.constant 0 : index
      %32 = vector.load %arg7[%c0_25, %c0_26] : memref<32x1xf32, #tpu.memory_space<vmem>>, vector<32x1xf32>
      tpu.vector_store %arg7[%c0_25, %c0_26], %31 {strides = array<i32>} : memref<32x1xf32, #tpu.memory_space<vmem>>, vector<32x1xf32>,
      %cst_27 = arith.constant 0.000000e+00 : f32
      %33 = vector.broadcast %cst_27 : f32 to vector<32x1xf32>
      %c0_28 = arith.constant 0 : index
      %c0_29 = arith.constant 0 : index
      %34 = vector.load %arg8[%c0_28, %c0_29] : memref<32x1xf32, #tpu.memory_space<vmem>>, vector<32x1xf32>
      tpu.vector_store %arg8[%c0_28, %c0_29], %33 {strides = array<i32>} : memref<32x1xf32, #tpu.memory_space<vmem>>, vector<32x1xf32>,
    } else {
    }
    %c0 = arith.constant 0 : index
    %c0_2 = arith.constant 0 : index
    %c0_3 = arith.constant 0 : index
    %5 = vector.load %arg2[%c0, %c0_2, %c0_3] : memref<1x32x256xf32, #tpu.memory_space<vmem>>, vector<1x32x256xf32>
    %6 = vector.shape_cast %5 : vector<1x32x256xf32> to vector<32x256xf32>
    %c0_4 = arith.constant 0 : index
    %c0_5 = arith.constant 0 : index
    %7 = vector.load %arg4[%c0_4, %c0_5] : memref<32x1xf32, #tpu.memory_space<vmem>>, vector<32x1xf32>
    %8 = vector.broadcast %7 : vector<32x1xf32> to vector<32x256xf32>
    %9 = arith.mulf %6, %8 : vector<32x256xf32>
    %c0_6 = arith.constant 0 : index
    %c0_7 = arith.constant 0 : index
    %10 = vector.load %arg5[%c0_6, %c0_7] : memref<32x1xf32, #tpu.memory_space<vmem>>, vector<32x1xf32>
    %11 = vector.broadcast %10 : vector<32x1xf32> to vector<32x256xf32>
    %12 = arith.addf %9, %11 : vector<32x256xf32>
    %cst = arith.constant 0.000000e+00 : f32
    %13 = vector.broadcast %cst : f32 to vector<32x256xf32>
    %14 = arith.maximumf %12, %13 : vector<32x256xf32>
    %c0_8 = arith.constant 0 : index
    %c0_9 = arith.constant 0 : index
    %15 = vector.load %arg3[%c0_8, %c0_9] : memref<32x32xf32, #tpu.memory_space<vmem>>, vector<32x32xf32>
    %cst_10 = arith.constant dense<0.000000e+00> : vector<32x256xf32>
    %16 = tpu.matmul %15, %14, %cst_10 {dimension_numbers = #tpu.dot_dimension_numbers<[1], [0], [0], [1], [0, 0, 1, 1], [], []>} : vector<32x32xf32>, vector<32x256xf32>, vector<32x256xf32> -> vector<32x256xf32>
    %c0_11 = arith.constant 0 : index
    %c0_12 = arith.constant 0 : index
    %c0_13 = arith.constant 0 : index
    %17 = vector.load %arg6[%c0_11, %c0_12, %c0_13] : memref<1x32x256xf32, #tpu.memory_space<vmem>>, vector<1x32x256xf32>
    %18 = vector.shape_cast %17 : vector<1x32x256xf32> to vector<32x256xf32>
    %19 = vector.shape_cast %16 : vector<32x256xf32> to vector<1x32x256xf32>
    tpu.vector_store %arg6[%c0_11, %c0_12, %c0_13], %19 {strides = array<i32>} : memref<1x32x256xf32, #tpu.memory_space<vmem>>, vector<1x32x256xf32>,
    %c0_14 = arith.constant 0 : index
    %c0_15 = arith.constant 0 : index
    %20 = vector.load %arg7[%c0_14, %c0_15] : memref<32x1xf32, #tpu.memory_space<vmem>>, vector<32x1xf32>
    %cst_16 = arith.constant dense<0.000000e+00> : vector<32xf32>
    %21 = vector.multi_reduction <add>, %16, %cst_16 [1] : vector<32x256xf32> to vector<32xf32>
    %22 = vector.shape_cast %21 : vector<32xf32> to vector<32x1xf32>
    %23 = arith.addf %20, %22 : vector<32x1xf32>
    %c0_17 = arith.constant 0 : index
    %c0_18 = arith.constant 0 : index
    %24 = vector.load %arg7[%c0_17, %c0_18] : memref<32x1xf32, #tpu.memory_space<vmem>>, vector<32x1xf32>
    tpu.vector_store %arg7[%c0_17, %c0_18], %23 {strides = array<i32>} : memref<32x1xf32, #tpu.memory_space<vmem>>, vector<32x1xf32>,
    %c0_19 = arith.constant 0 : index
    %c0_20 = arith.constant 0 : index
    %25 = vector.load %arg8[%c0_19, %c0_20] : memref<32x1xf32, #tpu.memory_space<vmem>>, vector<32x1xf32>
    %26 = arith.mulf %16, %16 : vector<32x256xf32>
    %cst_21 = arith.constant dense<0.000000e+00> : vector<32xf32>
    %27 = vector.multi_reduction <add>, %26, %cst_21 [1] : vector<32x256xf32> to vector<32xf32>
    %28 = vector.shape_cast %27 : vector<32xf32> to vector<32x1xf32>
    %29 = arith.addf %25, %28 : vector<32x1xf32>
    %c0_22 = arith.constant 0 : index
    %c0_23 = arith.constant 0 : index
    %30 = vector.load %arg8[%c0_22, %c0_23] : memref<32x1xf32, #tpu.memory_space<vmem>>, vector<32x1xf32>
    tpu.vector_store %arg8[%c0_22, %c0_23], %29 {strides = array<i32>} : memref<32x1xf32, #tpu.memory_space<vmem>>, vector<32x1xf32>,
    return
  }
  func.func @transform_0(%arg0: i32, %arg1: i32) -> (i32, i32, i32) {
    %c0_i32 = arith.constant 0 : i32
    %c0_i32_0 = arith.constant 0 : i32
    return %arg0, %c0_i32, %arg1 : i32, i32, i32
  }
  func.func @transform_1(%arg0: i32, %arg1: i32) -> (i32, i32) {
    %c0_i32 = arith.constant 0 : i32
    %c0_i32_0 = arith.constant 0 : i32
    %c0_i32_1 = arith.constant 0 : i32
    return %c0_i32, %c0_i32_0 : i32, i32
  }
  func.func @transform_2(%arg0: i32, %arg1: i32) -> (i32, i32) {
    %c0_i32 = arith.constant 0 : i32
    %c0_i32_0 = arith.constant 0 : i32
    %c0_i32_1 = arith.constant 0 : i32
    return %c0_i32, %c0_i32_0 : i32, i32
  }
  func.func @transform_3(%arg0: i32, %arg1: i32) -> (i32, i32) {
    %c0_i32 = arith.constant 0 : i32
    %c0_i32_0 = arith.constant 0 : i32
    %c0_i32_1 = arith.constant 0 : i32
    return %c0_i32, %c0_i32_0 : i32, i32
  }
  func.func @transform_4(%arg0: i32, %arg1: i32) -> (i32, i32, i32) {
    %c0_i32 = arith.constant 0 : i32
    %c0_i32_0 = arith.constant 0 : i32
    return %arg0, %c0_i32, %arg1 : i32, i32, i32
  }
  func.func @transform_5(%arg0: i32, %arg1: i32) -> (i32, i32) {
    %c0_i32 = arith.constant 0 : i32
    %c0_i32_0 = arith.constant 0 : i32
    %c0_i32_1 = arith.constant 0 : i32
    return %c0_i32, %c0_i32_0 : i32, i32
  }
  func.func @transform_6(%arg0: i32, %arg1: i32) -> (i32, i32) {
    %c0_i32 = arith.constant 0 : i32
    %c0_i32_0 = arith.constant 0 : i32
    %c0_i32_1 = arith.constant 0 : i32
    return %c0_i32, %c0_i32_0 : i32, i32
  }
}

module attributes {stable_mosaic.version = 11 : i64} {
  func.func @_conv1_stats_kernel(%arg0: i32, %arg1: i32, %arg2: memref<1x4x256xf32, #tpu.memory_space<vmem>>, %arg3: memref<32x4xf32, #tpu.memory_space<vmem>>, %arg4: memref<1x32x256xf32, #tpu.memory_space<vmem>>, %arg5: memref<32x1xf32, #tpu.memory_space<vmem>>, %arg6: memref<32x1xf32, #tpu.memory_space<vmem>>) attributes {dimension_semantics = [#tpu.dimension_semantics<arbitrary>, #tpu.dimension_semantics<arbitrary>], iteration_bounds = array<i64: 2, 1>, scalar_prefetch = 0 : i64, scratch_operands = 0 : i64, tpu.core_type = #tpu.core_type<tc>, window_params = [{transform_indices = @transform_0, window_bounds = array<i64: 1, 4, 256>}, {pipeline_mode = #tpu.pipeline_mode<synchronous>, transform_indices = @transform_1, window_bounds = array<i64: 32, 4>}, {transform_indices = @transform_2, window_bounds = array<i64: 1, 32, 256>}, {pipeline_mode = #tpu.pipeline_mode<synchronous>, transform_indices = @transform_3, window_bounds = array<i64: 32, 1>}, {pipeline_mode = #tpu.pipeline_mode<synchronous>, transform_indices = @transform_4, window_bounds = array<i64: 32, 1>}]} {
    %c0_i32 = arith.constant 0 : i32
    %0 = arith.cmpi eq, %arg0, %c0_i32 : i32
    %c0_i32_0 = arith.constant 0 : i32
    %1 = arith.cmpi eq, %arg1, %c0_i32_0 : i32
    %2 = arith.andi %0, %1 : i1
    %3 = arith.extui %2 : i1 to i32
    %c0_i32_1 = arith.constant 0 : i32
    %4 = arith.cmpi ne, %3, %c0_i32_1 : i32
    scf.if %4 {
      %cst_19 = arith.constant 0.000000e+00 : f32
      %23 = vector.broadcast %cst_19 : f32 to vector<32x1xf32>
      %c0_20 = arith.constant 0 : index
      %c0_21 = arith.constant 0 : index
      %24 = vector.load %arg5[%c0_20, %c0_21] : memref<32x1xf32, #tpu.memory_space<vmem>>, vector<32x1xf32>
      tpu.vector_store %arg5[%c0_20, %c0_21], %23 {strides = array<i32>} : memref<32x1xf32, #tpu.memory_space<vmem>>, vector<32x1xf32>,
      %cst_22 = arith.constant 0.000000e+00 : f32
      %25 = vector.broadcast %cst_22 : f32 to vector<32x1xf32>
      %c0_23 = arith.constant 0 : index
      %c0_24 = arith.constant 0 : index
      %26 = vector.load %arg6[%c0_23, %c0_24] : memref<32x1xf32, #tpu.memory_space<vmem>>, vector<32x1xf32>
      tpu.vector_store %arg6[%c0_23, %c0_24], %25 {strides = array<i32>} : memref<32x1xf32, #tpu.memory_space<vmem>>, vector<32x1xf32>,
    } else {
    }
    %c0 = arith.constant 0 : index
    %c0_2 = arith.constant 0 : index
    %5 = vector.load %arg3[%c0, %c0_2] : memref<32x4xf32, #tpu.memory_space<vmem>>, vector<32x4xf32>
    %c0_3 = arith.constant 0 : index
    %c0_4 = arith.constant 0 : index
    %c0_5 = arith.constant 0 : index
    %6 = vector.load %arg2[%c0_3, %c0_4, %c0_5] : memref<1x4x256xf32, #tpu.memory_space<vmem>>, vector<1x4x256xf32>
    %7 = vector.shape_cast %6 : vector<1x4x256xf32> to vector<4x256xf32>
    %cst = arith.constant dense<0.000000e+00> : vector<32x256xf32>
    %8 = tpu.matmul %5, %7, %cst {dimension_numbers = #tpu.dot_dimension_numbers<[1], [0], [0], [1], [0, 0, 1, 1], [], []>} : vector<32x4xf32>, vector<4x256xf32>, vector<32x256xf32> -> vector<32x256xf32>
    %c0_6 = arith.constant 0 : index
    %c0_7 = arith.constant 0 : index
    %c0_8 = arith.constant 0 : index
    %9 = vector.load %arg4[%c0_6, %c0_7, %c0_8] : memref<1x32x256xf32, #tpu.memory_space<vmem>>, vector<1x32x256xf32>
    %10 = vector.shape_cast %9 : vector<1x32x256xf32> to vector<32x256xf32>
    %11 = vector.shape_cast %8 : vector<32x256xf32> to vector<1x32x256xf32>
    tpu.vector_store %arg4[%c0_6, %c0_7, %c0_8], %11 {strides = array<i32>} : memref<1x32x256xf32, #tpu.memory_space<vmem>>, vector<1x32x256xf32>,
    %c0_9 = arith.constant 0 : index
    %c0_10 = arith.constant 0 : index
    %12 = vector.load %arg5[%c0_9, %c0_10] : memref<32x1xf32, #tpu.memory_space<vmem>>, vector<32x1xf32>
    %cst_11 = arith.constant dense<0.000000e+00> : vector<32xf32>
    %13 = vector.multi_reduction <add>, %8, %cst_11 [1] : vector<32x256xf32> to vector<32xf32>
    %14 = vector.shape_cast %13 : vector<32xf32> to vector<32x1xf32>
    %15 = arith.addf %12, %14 : vector<32x1xf32>
    %c0_12 = arith.constant 0 : index
    %c0_13 = arith.constant 0 : index
    %16 = vector.load %arg5[%c0_12, %c0_13] : memref<32x1xf32, #tpu.memory_space<vmem>>, vector<32x1xf32>
    tpu.vector_store %arg5[%c0_12, %c0_13], %15 {strides = array<i32>} : memref<32x1xf32, #tpu.memory_space<vmem>>, vector<32x1xf32>,
    %c0_14 = arith.constant 0 : index
    %c0_15 = arith.constant 0 : index
    %17 = vector.load %arg6[%c0_14, %c0_15] : memref<32x1xf32, #tpu.memory_space<vmem>>, vector<32x1xf32>
    %18 = arith.mulf %8, %8 : vector<32x256xf32>
    %cst_16 = arith.constant dense<0.000000e+00> : vector<32xf32>
    %19 = vector.multi_reduction <add>, %18, %cst_16 [1] : vector<32x256xf32> to vector<32xf32>
    %20 = vector.shape_cast %19 : vector<32xf32> to vector<32x1xf32>
    %21 = arith.addf %17, %20 : vector<32x1xf32>
    %c0_17 = arith.constant 0 : index
    %c0_18 = arith.constant 0 : index
    %22 = vector.load %arg6[%c0_17, %c0_18] : memref<32x1xf32, #tpu.memory_space<vmem>>, vector<32x1xf32>
    tpu.vector_store %arg6[%c0_17, %c0_18], %21 {strides = array<i32>} : memref<32x1xf32, #tpu.memory_space<vmem>>, vector<32x1xf32>,
    return
  }
  func.func @transform_0(%arg0: i32, %arg1: i32) -> (i32, i32, i32) {
    %c0_i32 = arith.constant 0 : i32
    %c0_i32_0 = arith.constant 0 : i32
    return %arg0, %c0_i32, %arg1 : i32, i32, i32
  }
  func.func @transform_1(%arg0: i32, %arg1: i32) -> (i32, i32) {
    %c0_i32 = arith.constant 0 : i32
    %c0_i32_0 = arith.constant 0 : i32
    %c0_i32_1 = arith.constant 0 : i32
    return %c0_i32, %c0_i32_0 : i32, i32
  }
  func.func @transform_2(%arg0: i32, %arg1: i32) -> (i32, i32, i32) {
    %c0_i32 = arith.constant 0 : i32
    %c0_i32_0 = arith.constant 0 : i32
    return %arg0, %c0_i32, %arg1 : i32, i32, i32
  }
  func.func @transform_3(%arg0: i32, %arg1: i32) -> (i32, i32) {
    %c0_i32 = arith.constant 0 : i32
    %c0_i32_0 = arith.constant 0 : i32
    %c0_i32_1 = arith.constant 0 : i32
    return %c0_i32, %c0_i32_0 : i32, i32
  }
  func.func @transform_4(%arg0: i32, %arg1: i32) -> (i32, i32) {
    %c0_i32 = arith.constant 0 : i32
    %c0_i32_0 = arith.constant 0 : i32
    %c0_i32_1 = arith.constant 0 : i32
    return %c0_i32, %c0_i32_0 : i32, i32
  }
}

module attributes {stable_mosaic.version = 11 : i64} {
  func.func @_bn2_apply_kernel(%arg0: i32, %arg1: i32, %arg2: memref<1x32x256xf32, #tpu.memory_space<vmem>>, %arg3: memref<32x1xf32, #tpu.memory_space<vmem>>, %arg4: memref<32x1xf32, #tpu.memory_space<vmem>>, %arg5: memref<1x32x256xf32, #tpu.memory_space<vmem>>) attributes {dimension_semantics = [#tpu.dimension_semantics<parallel>, #tpu.dimension_semantics<parallel>], iteration_bounds = array<i64: 2, 1>, scalar_prefetch = 0 : i64, scratch_operands = 0 : i64, tpu.core_type = #tpu.core_type<tc>, window_params = [{transform_indices = @transform_0, window_bounds = array<i64: 1, 32, 256>}, {pipeline_mode = #tpu.pipeline_mode<synchronous>, transform_indices = @transform_1, window_bounds = array<i64: 32, 1>}, {pipeline_mode = #tpu.pipeline_mode<synchronous>, transform_indices = @transform_2, window_bounds = array<i64: 32, 1>}, {transform_indices = @transform_3, window_bounds = array<i64: 1, 32, 256>}]} {
    %c0 = arith.constant 0 : index
    %c0_0 = arith.constant 0 : index
    %c0_1 = arith.constant 0 : index
    %0 = vector.load %arg2[%c0, %c0_0, %c0_1] : memref<1x32x256xf32, #tpu.memory_space<vmem>>, vector<1x32x256xf32>
    %1 = vector.shape_cast %0 : vector<1x32x256xf32> to vector<32x256xf32>
    %c0_2 = arith.constant 0 : index
    %c0_3 = arith.constant 0 : index
    %2 = vector.load %arg3[%c0_2, %c0_3] : memref<32x1xf32, #tpu.memory_space<vmem>>, vector<32x1xf32>
    %3 = vector.broadcast %2 : vector<32x1xf32> to vector<32x256xf32>
    %4 = arith.mulf %1, %3 : vector<32x256xf32>
    %c0_4 = arith.constant 0 : index
    %c0_5 = arith.constant 0 : index
    %5 = vector.load %arg4[%c0_4, %c0_5] : memref<32x1xf32, #tpu.memory_space<vmem>>, vector<32x1xf32>
    %6 = vector.broadcast %5 : vector<32x1xf32> to vector<32x256xf32>
    %7 = arith.addf %4, %6 : vector<32x256xf32>
    %c0_6 = arith.constant 0 : index
    %c0_7 = arith.constant 0 : index
    %c0_8 = arith.constant 0 : index
    %8 = vector.load %arg5[%c0_6, %c0_7, %c0_8] : memref<1x32x256xf32, #tpu.memory_space<vmem>>, vector<1x32x256xf32>
    %9 = vector.shape_cast %8 : vector<1x32x256xf32> to vector<32x256xf32>
    %10 = vector.shape_cast %7 : vector<32x256xf32> to vector<1x32x256xf32>
    tpu.vector_store %arg5[%c0_6, %c0_7, %c0_8], %10 {strides = array<i32>} : memref<1x32x256xf32, #tpu.memory_space<vmem>>, vector<1x32x256xf32>,
    return
  }
  func.func @transform_0(%arg0: i32, %arg1: i32) -> (i32, i32, i32) {
    %c0_i32 = arith.constant 0 : i32
    %c0_i32_0 = arith.constant 0 : i32
    return %arg0, %c0_i32, %arg1 : i32, i32, i32
  }
  func.func @transform_1(%arg0: i32, %arg1: i32) -> (i32, i32) {
    %c0_i32 = arith.constant 0 : i32
    %c0_i32_0 = arith.constant 0 : i32
    %c0_i32_1 = arith.constant 0 : i32
    return %c0_i32, %c0_i32_0 : i32, i32
  }
  func.func @transform_2(%arg0: i32, %arg1: i32) -> (i32, i32) {
    %c0_i32 = arith.constant 0 : i32
    %c0_i32_0 = arith.constant 0 : i32
    %c0_i32_1 = arith.constant 0 : i32
    return %c0_i32, %c0_i32_0 : i32, i32
  }
  func.func @transform_3(%arg0: i32, %arg1: i32) -> (i32, i32, i32) {
    %c0_i32 = arith.constant 0 : i32
    %c0_i32_0 = arith.constant 0 : i32
    return %arg0, %c0_i32, %arg1 : i32, i32, i32
  }
}

</mosaic_0001>

<llo_original>
// kernel: projection_conv_forward.5
$region0: #{projection_conv_forward.5}
  #allocation0 [shape = 'u32[]', space=smem, size = 0x4, offset = 0x4, fixed_abs, tag = 'smem constant byte address 0x4 - core index']
  #allocation1 [shape = 'u32[72,128]{1,0:T(1,128)}', space=vmem, size = 0x9000, scoped, tag = 'internal scratch']
  %s0 = inlined_call_operand.vmem [shape: f32[2,32,256], index: 0, kind: input, shape index: {}, may-alias: {0,3}]
  %s1 = inlined_call_operand.vmem [shape: f32[32,1], index: 1, kind: input, shape index: {}]
  %s2 = inlined_call_operand.vmem [shape: f32[32,1], index: 2, kind: input, shape index: {}]
  %s3 = inlined_call_operand.vmem [shape: f32[2,32,256], index: 3, kind: output, shape index: {}, may-alias: {0,3}]
  %s4 = sld [smem:[#allocation0]]
  $region45: #{projection_conv_forward.5} parent=0
    _
  %s6 = ssub.s32 1, %s4
  %s7 = scalar_select 0, %s6, %s4
  loop: start=0, step=1, limit=4
  $region2: #{projection_conv_forward.5} parent=0 // loop_pre_header
    _
  $region3: #{projection_conv_forward.5} parent=0 // loop_header
    %s9 = sphi 0, %s13
    %p10 = scmp.ge.s32.totalorder %s9, 4
    %s16 = sphi 0, %s28
    %s17 = sphi 0, %s24
    %s18 = sphi 0, %s16
    %s19 = sphi 0, %s17
    %s20 = sphi 0, %s18
    %s21 = sphi 0, %s19
    %s33 = sphi 0, %s35
    %s36 = sphi 0, %s33
    %s37 = sphi 0, %s36
    %s53 = sphi 0, %s37
    %s57 = sphi 0, %s57
    %s59 = sphi 0, %s57
    %s60 = sphi 0, %s59
    %s74 = sphi 0, %s60
    %s78 = sphi 0, %s78
    %s80 = sphi 0, %s78
    %s81 = sphi 0, %s80
    %s95 = sphi 0, %s81
    %s103 = sphi 0, %s105
    %s106 = sphi 0, %s103
    %s107 = sphi 0, %s106
    %s123 = sphi 0, %s107
  $region4: #{projection_conv_forward.5} parent=0 // loop_header_branch
    %12 = sbr.rel (%p10) target = $region8
  $region5: #{projection_conv_forward.5} parent=0 // loop_body
    %s14 = ssub.s32 %s9, 1
    %s15 = ssub.s32 %s9, 2
    %s22 = sadd.s32 1, %s17
    %p23 = scmp.ge.s32.totalorder %s22, 1
    %s24 = scalar_select %p23, 0, %s22
    %s25 = sadd.s32 1, %s16
    %s26 = scalar_select %p23, %s25, %s16
    %p27 = scmp.ge.s32.totalorder %s26, 2
    %s28 = scalar_select %p27, 0, %s26
    %s29 = ssub.s32 %s16, %s28
    %s30 = ssub.s32 %s17, %s24
    %s31 = sor.u32 %s29, %s30
    %p32 = scmp.eq.s32.totalorder %s31, 0
    %s34 = sadd.s32 %s33, 1
    %s35 = scalar_select %p32, %s33, %s34
    %p38 = pneg %p32
    %p39 = scmp.eq.s32.totalorder %s9, 1
    %p40 = por %p38, %p39
    %p41 = scmp.ne.s32.totalorder %s33, %s36
    %p42 = scmp.eq.s32.totalorder %s9, 0
    %p43 = por %p41, %p42
    %p44 = scmp.ne.s32.totalorder %s33, %s36
    %p45 = scmp.eq.s32.totalorder %s14, 1
    %p46 = por %p44, %p45
    %p47 = scmp.ne.s32.totalorder %s36, %s37
    %p48 = scmp.eq.s32.totalorder %s14, 0
    %p49 = por %p47, %p48
    %p50 = scmp.ne.s32.totalorder %s36, %s37
    %p51 = scmp.eq.s32.totalorder %s15, 1
    %p52 = por %p50, %p51
    %p54 = scmp.ne.s32.totalorder %s37, %s53
    %p55 = scmp.eq.s32.totalorder %s15, 0
    %p56 = por %p54, %p55
    %s58 = sadd.s32 %s57, 1
    %p61 = scmp.eq.s32.totalorder %s9, 1
    %p62 = scmp.ne.s32.totalorder %s57, %s59
    %p63 = scmp.eq.s32.totalorder %s9, 0
    %p64 = por %p62, %p63
    %p65 = scmp.ne.s32.totalorder %s57, %s59
    %p66 = scmp.eq.s32.totalorder %s14, 1
    %p67 = por %p65, %p66
    %p68 = scmp.ne.s32.totalorder %s59, %s60
    %p69 = scmp.eq.s32.totalorder %s14, 0
    %p70 = por %p68, %p69
    %p71 = scmp.ne.s32.totalorder %s59, %s60
    %p72 = scmp.eq.s32.totalorder %s15, 1
    %p73 = por %p71, %p72
    %p75 = scmp.ne.s32.totalorder %s60, %s74
    %p76 = scmp.eq.s32.totalorder %s15, 0
    %p77 = por %p75, %p76
    %s79 = sadd.s32 %s78, 1
    %p82 = scmp.eq.s32.totalorder %s9, 1
    %p83 = scmp.ne.s32.totalorder %s78, %s80
    %p84 = scmp.eq.s32.totalorder %s9, 0
    %p85 = por %p83, %p84
    %p86 = scmp.ne.s32.totalorder %s78, %s80
    %p87 = scmp.eq.s32.totalorder %s14, 1
    %p88 = por %p86, %p87
    %p89 = scmp.ne.s32.totalorder %s80, %s81
    %p90 = scmp.eq.s32.totalorder %s14, 0
    %p91 = por %p89, %p90
    %p92 = scmp.ne.s32.totalorder %s80, %s81
    %p93 = scmp.eq.s32.totalorder %s15, 1
    %p94 = por %p92, %p93
    %p96 = scmp.ne.s32.totalorder %s81, %s95
    %p97 = scmp.eq.s32.totalorder %s15, 0
    %p98 = por %p96, %p97
    %s99 = ssub.s32 %s16, %s28
    %s100 = ssub.s32 %s17, %s24
    %s101 = sor.u32 %s99, %s100
    %p102 = scmp.eq.s32.totalorder %s101, 0
    %s104 = sadd.s32 %s103, 1
    %s105 = scalar_select %p102, %s103, %s104
    %p108 = pneg %p102
    %p109 = scmp.eq.s32.totalorder %s9, 1
    %p110 = por %p108, %p109
    %p111 = scmp.ne.s32.totalorder %s103, %s106
    %p112 = scmp.eq.s32.totalorder %s9, 0
    %p113 = por %p111, %p112
    %p114 = scmp.ne.s32.totalorder %s103, %s106
    %p115 = scmp.eq.s32.totalorder %s14, 1
    %p116 = por %p114, %p115
    %p117 = scmp.ne.s32.totalorder %s106, %s107
    %p118 = scmp.eq.s32.totalorder %s14, 0
    %p119 = por %p117, %p118
    %p120 = scmp.ne.s32.totalorder %s106, %s107
    %p121 = scmp.eq.s32.totalorder %s15, 1
    %p122 = por %p120, %p121
    %p124 = scmp.ne.s32.totalorder %s107, %s123
    %p125 = scmp.eq.s32.totalorder %s15, 0
    %p126 = por %p124, %p125
    %p127 = scmp.le.s32.totalorder 1, %s9
    %p128 = scmp.lt.s32.totalorder %s9, 3
    %p129 = pnand %p127, %p128
    %p130 = pneg %p129
    // Predicated region
    $region9: #{projection_conv_forward.5} parent=5 // pred_check
      _
    $region10: #{projection_conv_forward.5} parent=5 // pred_check_branch
      %132 = sbr.rel (%p129) target = $region12
    $region11: #{projection_conv_forward.5} parent=5 // pred_region
      %s133 = ssub.s32 %s9, 1
      // Predicated region
      $region13: #{projection_conv_forward.5} parent=11 // pred_check
        %p134 = pneg %p70
      $region14: #{projection_conv_forward.5} parent=11 // pred_check_branch
        %136 = sbr.rel (%p134) target = $region16
      $region15: #{projection_conv_forward.5} parent=11 // pred_region
        _
      $region16: #{projection_conv_forward.5} parent=11 // pred_fallthru
        _
      // Predicated region
      $region17: #{projection_conv_forward.5} parent=11 // pred_check
        %p137 = pneg %p91
      $region18: #{projection_conv_forward.5} parent=11 // pred_check_branch
        %139 = sbr.rel (%p137) target = $region20
      $region19: #{projection_conv_forward.5} parent=11 // pred_region
        _
      $region20: #{projection_conv_forward.5} parent=11 // pred_fallthru
        _
    $region12: #{projection_conv_forward.5} parent=5 // pred_fallthru
      _
    %p140 = scmp.lt.s32.totalorder %s9, 2
    // Predicated region
    $region21: #{projection_conv_forward.5} parent=5 // pred_check
      %p141 = pneg %p140
    $region22: #{projection_conv_forward.5} parent=5 // pred_check_branch
      %143 = sbr.rel (%p141) target = $region24
    $region23: #{projection_conv_forward.5} parent=5 // pred_region
      // Predicated region
      $region25: #{projection_conv_forward.5} parent=23 // pred_check
        %p144 = pneg %p43
      $region26: #{projection_conv_forward.5} parent=23 // pred_check_branch
        %146 = sbr.rel (%p144) target = $region28
      $region27: #{projection_conv_forward.5} parent=23 // pred_region
        %s147 = smul.u32 2, %s17
        %p148 = scmp.lt.s32.totalorder %s16, 1
        %s149 = scalar_select %p148, %s16, 1
        %p150 = scmp.lt.s32.totalorder %s147, 1
        %s151 = scalar_select %p150, %s147, 1
        %s152 = smul.addr %s149, 8
        %s153 = sadd.s32 %s151, %s152
        %s154 = smul.addr %s153, 8
        %s155 = scalar_lea.vmem %s0, %s154
        %s156 = smul.u32 2, %s17
      $region28: #{projection_conv_forward.5} parent=23 // pred_fallthru
        _
    $region24: #{projection_conv_forward.5} parent=5 // pred_fallthru
      _
    %p157 = scmp.le.s32.totalorder 1, %s9
    %p158 = scmp.lt.s32.totalorder %s9, 3
    %p159 = pnand %p157, %p158
    %p160 = pneg %p159
    // Predicated region
    $region29: #{projection_conv_forward.5} parent=5 // pred_check
      _
    $region30: #{projection_conv_forward.5} parent=5 // pred_check_branch
      %162 = sbr.rel (%p159) target = $region32
    $region31: #{projection_conv_forward.5} parent=5 // pred_region
      %s163 = ssub.s32 %s9, 1
      %s164 = smul.u32 2, %s19
      %p165 = scmp.lt.s32.totalorder %s18, 1
      %s166 = scalar_select %p165, %s18, 1
      %p167 = scmp.lt.s32.totalorder %s164, 1
      %s168 = scalar_select %p167, %s164, 1
      %s169 = smul.addr %s166, 8
      %s170 = sadd.s32 %s168, %s169
      %s171 = smul.addr %s170, 8
      %s172 = scalar_lea.vmem %s0, %s171
      %p173 = pneg %p49
      %p174 = pneg %p46
      %p175 = pneg %p70
      %p176 = pneg %p67
      %p177 = pneg %p91
      %p178 = pneg %p88
      %p179 = pneg %p119
      %p180 = pneg %p116
      %s181 = smul.u32 2, %s19
      %p182 = scmp.lt.s32.totalorder %s18, 1
      %s183 = scalar_select %p182, %s18, 1
      %p184 = scmp.lt.s32.totalorder %s181, 1
      %s185 = scalar_select %p184, %s181, 1
      %s186 = smul.addr %s183, 8
      %s187 = sadd.s32 %s185, %s186
      %s188 = smul.addr %s187, 8
      %s189 = scalar_lea.vmem %s3, %s188
      %s190 = smul.u32 2, %s19
      %p191 = scmp.lt.s32.totalorder %s18, 1
      %s192 = scalar_select %p191, %s18, 1
      %p193 = scmp.lt.s32.totalorder %s190, 1
      %s194 = scalar_select %p193, %s190, 1
      %s195 = smul.addr %s192, 8
      %s196 = sadd.s32 %s194, %s195
      %s197 = smul.addr %s196, 8
      %s198 = scalar_lea.vmem %s0, %s197
      %s199 = smul.u32 2, %s19
      %s200 = smul.u32 2, %s19
      %p201 = scmp.lt.s32.totalorder %s18, 1
      %s202 = scalar_select %p201, %s18, 1
      %p203 = scmp.lt.s32.totalorder %s200, 1
      %s204 = scalar_select %p203, %s200, 1
      %s205 = smul.addr %s202, 8
      %s206 = sadd.s32 %s204, %s205
      %s207 = smul.addr %s206, 8
      %s208 = scalar_lea.vmem %s3, %s207
      %s209 = smul.u32 2, %s19
      %v210 = vld [vmem:[%s198] sm:$0xff]
      %v211 = vld [vmem:[%s198 + $0x8] sm:$0xff]
      %v212 = vld [vmem:[%s198 + $0x10] sm:$0xff]
      %v213 = vld [vmem:[%s198 + $0x18] sm:$0xff]
      %v214 = vld [vmem:[%s198 + $0x20] sm:$0xff]
      %v215 = vld [vmem:[%s198 + $0x28] sm:$0xff]
      %v216 = vld [vmem:[%s198 + $0x30] sm:$0xff]
      %v217 = vld [vmem:[%s198 + $0x38] sm:$0xff]
      %v218 = vld [vmem:[%s1] sm:$0xff]
      %v219 = vld [vmem:[%s1 + $0x8] sm:$0xff]
      %v220 = vld [vmem:[%s1 + $0x10] sm:$0xff]
      %v221 = vld [vmem:[%s1 + $0x18] sm:$0xff]
      %223 = vset.pattern.permute.xlu0 0
      %224 = vperm.xlu0 %223, %v218
      %v225 = vpop.permute.xlu0 %224
      %228 = vset.pattern.permute.xlu0 0
      %229 = vperm.xlu0 %228, %v219
      %v230 = vpop.permute.xlu0 %229
      %233 = vset.pattern.permute.xlu0 0
      %234 = vperm.xlu0 %233, %v220
      %v235 = vpop.permute.xlu0 %234
      %238 = vset.pattern.permute.xlu0 0
      %239 = vperm.xlu0 %238, %v221
      %v240 = vpop.permute.xlu0 %239
      %v242 = vmul.f32 %v210, %v225
      %v243 = vmul.f32 %v211, %v225
      %v244 = vmul.f32 %v212, %v230
      %v245 = vmul.f32 %v213, %v230
      %v246 = vmul.f32 %v214, %v235
      %v247 = vmul.f32 %v215, %v235
      %v248 = vmul.f32 %v216, %v240
      %v249 = vmul.f32 %v217, %v240
      %v250 = vld [vmem:[%s2] sm:$0xff]
      %v251 = vld [vmem:[%s2 + $0x8] sm:$0xff]
      %v252 = vld [vmem:[%s2 + $0x10] sm:$0xff]
      %v253 = vld [vmem:[%s2 + $0x18] sm:$0xff]
      %255 = vset.pattern.permute.xlu0 0
      %256 = vperm.xlu0 %255, %v250
      %v257 = vpop.permute.xlu0 %256
      %260 = vset.pattern.permute.xlu0 0
      %261 = vperm.xlu0 %260, %v251
      %v262 = vpop.permute.xlu0 %261
      %265 = vset.pattern.permute.xlu0 0
      %266 = vperm.xlu0 %265, %v252
      %v267 = vpop.permute.xlu0 %266
      %270 = vset.pattern.permute.xlu0 0
      %271 = vperm.xlu0 %270, %v253
      %v272 = vpop.permute.xlu0 %271
      %v274 = vadd.f32 %v242, %v257
      %v275 = vadd.f32 %v243, %v257
      %v276 = vadd.f32 %v244, %v262
      %v277 = vadd.f32 %v245, %v262
      %v278 = vadd.f32 %v246, %v267
      %v279 = vadd.f32 %v247, %v267
      %v280 = vadd.f32 %v248, %v272
      %v281 = vadd.f32 %v249, %v272
      %282 = vst [vmem:[%s208] sm:$0xff] %v274
      %283 = vst [vmem:[%s208 + $0x8] sm:$0xff] %v275
      %284 = vst [vmem:[%s208 + $0x10] sm:$0xff] %v276
      %285 = vst [vmem:[%s208 + $0x18] sm:$0xff] %v277
      %286 = vst [vmem:[%s208 + $0x20] sm:$0xff] %v278
      %287 = vst [vmem:[%s208 + $0x28] sm:$0xff] %v279
      %288 = vst [vmem:[%s208 + $0x30] sm:$0xff] %v280
      %289 = vst [vmem:[%s208 + $0x38] sm:$0xff] %v281
      %s290 = smul.u32 2, %s19
      %p291 = scmp.lt.s32.totalorder %s18, 1
      %s292 = scalar_select %p291, %s18, 1
      %p293 = scmp.lt.s32.totalorder %s290, 1
      %s294 = scalar_select %p293, %s290, 1
      %s295 = smul.addr %s292, 8
      %s296 = sadd.s32 %s294, %s295
      %s297 = smul.addr %s296, 8
      %s298 = scalar_lea.vmem %s3, %s297
      // Predicated region
      $region33: #{projection_conv_forward.5} parent=31 // pred_check
        %p299 = pneg %p116
      $region34: #{projection_conv_forward.5} parent=31 // pred_check_branch
        %301 = sbr.rel (%p299) target = $region36
      $region35: #{projection_conv_forward.5} parent=31 // pred_region
        %s302 = smul.u32 2, %s19
      $region36: #{projection_conv_forward.5} parent=31 // pred_fallthru
        _
    $region32: #{projection_conv_forward.5} parent=5 // pred_fallthru
      _
    %p303 = scmp.le.s32.totalorder 2, %s9
    // Predicated region
    $region37: #{projection_conv_forward.5} parent=5 // pred_check
      %p304 = pneg %p303
    $region38: #{projection_conv_forward.5} parent=5 // pred_check_branch
      %306 = sbr.rel (%p304) target = $region40
    $region39: #{projection_conv_forward.5} parent=5 // pred_region
      %s307 = ssub.s32 %s9, 2
      // Predicated region
      $region41: #{projection_conv_forward.5} parent=39 // pred_check
        %p308 = pneg %p122
      $region42: #{projection_conv_forward.5} parent=39 // pred_check_branch
        %310 = sbr.rel (%p308) target = $region44
      $region43: #{projection_conv_forward.5} parent=39 // pred_region
        %s311 = smul.u32 2, %s21
        %p312 = scmp.lt.s32.totalorder %s20, 1
        %s313 = scalar_select %p312, %s20, 1
        %p314 = scmp.lt.s32.totalorder %s311, 1
        %s315 = scalar_select %p314, %s311, 1
        %s316 = smul.addr %s313, 8
        %s317 = sadd.s32 %s315, %s316
        %s318 = smul.addr %s317, 8
        %s319 = scalar_lea.vmem %s3, %s318
      $region44: #{projection_conv_forward.5} parent=39 // pred_fallthru
        _
    $region40: #{projection_conv_forward.5} parent=5 // pred_fallthru
      _
  $region6: #{projection_conv_forward.5} parent=0 // loop_footer
    %s13 = sadd.s32 1, %s9
  $region7: #{projection_conv_forward.5} parent=0 // loop_footer_branch
    %8 = sbr.rel target = $region3
  $region8: #{projection_conv_forward.5} parent=0 // loop_exit
    _

// kernel: projection_conv_forward.4
$region0: #{projection_conv_forward.4}
  #allocation0 [shape = 'u32[]', space=smem, size = 0x4, offset = 0x4, fixed_abs, tag = 'smem constant byte address 0x4 - core index']
  #allocation1 [shape = 'u32[72,128]{1,0:T(1,128)}', space=vmem, size = 0x9000, scoped, tag = 'internal scratch']
  %s0 = inlined_call_operand.vmem [shape: f32[2,32,256], index: 0, kind: input, shape index: {}]
  %s1 = inlined_call_operand.vmem [shape: f32[32,32], index: 1, kind: input, shape index: {}]
  %s2 = inlined_call_operand.vmem [shape: f32[32,1], index: 2, kind: input, shape index: {}]
  %s3 = inlined_call_operand.vmem [shape: f32[32,1], index: 3, kind: input, shape index: {}]
  %s4 = inlined_call_operand.vmem [shape: f32[2,32,256], index: 4, kind: output, shape index: {0}]
  %s5 = inlined_call_operand.vmem [shape: f32[32,1], index: 5, kind: output, shape index: {1}]
  %s6 = inlined_call_operand.vmem [shape: f32[32,1], index: 6, kind: output, shape index: {2}]
  %7 = xla_tuple %s4, %s5, %s6
  %s8 = sld [smem:[#allocation0]]
  $region69: #{projection_conv_forward.4} parent=0
    _
  %s10 = ssub.s32 1, %s8
  %s11 = scalar_select 0, %s10, %s8
  loop: start=0, step=1, limit=4
  $region2: #{projection_conv_forward.4} parent=0 // loop_pre_header
    _
  $region3: #{projection_conv_forward.4} parent=0 // loop_header
    %s13 = sphi 0, %s17
    %p14 = scmp.ge.s32.totalorder %s13, 4
    %s20 = sphi 0, %s32
    %s21 = sphi 0, %s28
    %s22 = sphi 0, %s20
    %s23 = sphi 0, %s21
    %s24 = sphi 0, %s22
    %s25 = sphi 0, %s23
    %s37 = sphi 0, %s39
    %s40 = sphi 0, %s37
    %s41 = sphi 0, %s40
    %s57 = sphi 0, %s41
    %s61 = sphi 0, %s61
    %s63 = sphi 0, %s61
    %s64 = sphi 0, %s63
    %s78 = sphi 0, %s64
    %s82 = sphi 0, %s82
    %s84 = sphi 0, %s82
    %s85 = sphi 0, %s84
    %s99 = sphi 0, %s85
    %s103 = sphi 0, %s103
    %s105 = sphi 0, %s103
    %s106 = sphi 0, %s105
    %s120 = sphi 0, %s106
    %s128 = sphi 0, %s130
    %s131 = sphi 0, %s128
    %s132 = sphi 0, %s131
    %s148 = sphi 0, %s132
    %s152 = sphi 0, %s152
    %s154 = sphi 0, %s152
    %s155 = sphi 0, %s154
    %s169 = sphi 0, %s155
    %s173 = sphi 0, %s173
    %s175 = sphi 0, %s173
    %s176 = sphi 0, %s175
    %s190 = sphi 0, %s176
  $region4: #{projection_conv_forward.4} parent=0 // loop_header_branch
    %16 = sbr.rel (%p14) target = $region8
  $region5: #{projection_conv_forward.4} parent=0 // loop_body
    %s18 = ssub.s32 %s13, 1
    %s19 = ssub.s32 %s13, 2
    %s26 = sadd.s32 1, %s21
    %p27 = scmp.ge.s32.totalorder %s26, 1
    %s28 = scalar_select %p27, 0, %s26
    %s29 = sadd.s32 1, %s20
    %s30 = scalar_select %p27, %s29, %s20
    %p31 = scmp.ge.s32.totalorder %s30, 2
    %s32 = scalar_select %p31, 0, %s30
    %s33 = ssub.s32 %s20, %s32
    %s34 = ssub.s32 %s21, %s28
    %s35 = sor.u32 %s33, %s34
    %p36 = scmp.eq.s32.totalorder %s35, 0
    %s38 = sadd.s32 %s37, 1
    %s39 = scalar_select %p36, %s37, %s38
    %p42 = pneg %p36
    %p43 = scmp.eq.s32.totalorder %s13, 1
    %p44 = por %p42, %p43
    %p45 = scmp.ne.s32.totalorder %s37, %s40
    %p46 = scmp.eq.s32.totalorder %s13, 0
    %p47 = por %p45, %p46
    %p48 = scmp.ne.s32.totalorder %s37, %s40
    %p49 = scmp.eq.s32.totalorder %s18, 1
    %p50 = por %p48, %p49
    %p51 = scmp.ne.s32.totalorder %s40, %s41
    %p52 = scmp.eq.s32.totalorder %s18, 0
    %p53 = por %p51, %p52
    %p54 = scmp.ne.s32.totalorder %s40, %s41
    %p55 = scmp.eq.s32.totalorder %s19, 1
    %p56 = por %p54, %p55
    %p58 = scmp.ne.s32.totalorder %s41, %s57
    %p59 = scmp.eq.s32.totalorder %s19, 0
    %p60 = por %p58, %p59
    %s62 = sadd.s32 %s61, 1
    %p65 = scmp.eq.s32.totalorder %s13, 1
    %p66 = scmp.ne.s32.totalorder %s61, %s63
    %p67 = scmp.eq.s32.totalorder %s13, 0
    %p68 = por %p66, %p67
    %p69 = scmp.ne.s32.totalorder %s61, %s63
    %p70 = scmp.eq.s32.totalorder %s18, 1
    %p71 = por %p69, %p70
    %p72 = scmp.ne.s32.totalorder %s63, %s64
    %p73 = scmp.eq.s32.totalorder %s18, 0
    %p74 = por %p72, %p73
    %p75 = scmp.ne.s32.totalorder %s63, %s64
    %p76 = scmp.eq.s32.totalorder %s19, 1
    %p77 = por %p75, %p76
    %p79 = scmp.ne.s32.totalorder %s64, %s78
    %p80 = scmp.eq.s32.totalorder %s19, 0
    %p81 = por %p79, %p80
    %s83 = sadd.s32 %s82, 1
    %p86 = scmp.eq.s32.totalorder %s13, 1
    %p87 = scmp.ne.s32.totalorder %s82, %s84
    %p88 = scmp.eq.s32.totalorder %s13, 0
    %p89 = por %p87, %p88
    %p90 = scmp.ne.s32.totalorder %s82, %s84
    %p91 = scmp.eq.s32.totalorder %s18, 1
    %p92 = por %p90, %p91
    %p93 = scmp.ne.s32.totalorder %s84, %s85
    %p94 = scmp.eq.s32.totalorder %s18, 0
    %p95 = por %p93, %p94
    %p96 = scmp.ne.s32.totalorder %s84, %s85
    %p97 = scmp.eq.s32.totalorder %s19, 1
    %p98 = por %p96, %p97
    %p100 = scmp.ne.s32.totalorder %s85, %s99
    %p101 = scmp.eq.s32.totalorder %s19, 0
    %p102 = por %p100, %p101
    %s104 = sadd.s32 %s103, 1
    %p107 = scmp.eq.s32.totalorder %s13, 1
    %p108 = scmp.ne.s32.totalorder %s103, %s105
    %p109 = scmp.eq.s32.totalorder %s13, 0
    %p110 = por %p108, %p109
    %p111 = scmp.ne.s32.totalorder %s103, %s105
    %p112 = scmp.eq.s32.totalorder %s18, 1
    %p113 = por %p111, %p112
    %p114 = scmp.ne.s32.totalorder %s105, %s106
    %p115 = scmp.eq.s32.totalorder %s18, 0
    %p116 = por %p114, %p115
    %p117 = scmp.ne.s32.totalorder %s105, %s106
    %p118 = scmp.eq.s32.totalorder %s19, 1
    %p119 = por %p117, %p118
    %p121 = scmp.ne.s32.totalorder %s106, %s120
    %p122 = scmp.eq.s32.totalorder %s19, 0
    %p123 = por %p121, %p122
    %s124 = ssub.s32 %s20, %s32
    %s125 = ssub.s32 %s21, %s28
    %s126 = sor.u32 %s124, %s125
    %p127 = scmp.eq.s32.totalorder %s126, 0
    %s129 = sadd.s32 %s128, 1
    %s130 = scalar_select %p127, %s128, %s129
    %p133 = pneg %p127
    %p134 = scmp.eq.s32.totalorder %s13, 1
    %p135 = por %p133, %p134
    %p136 = scmp.ne.s32.totalorder %s128, %s131
    %p137 = scmp.eq.s32.totalorder %s13, 0
    %p138 = por %p136, %p137
    %p139 = scmp.ne.s32.totalorder %s128, %s131
    %p140 = scmp.eq.s32.totalorder %s18, 1
    %p141 = por %p139, %p140
    %p142 = scmp.ne.s32.totalorder %s131, %s132
    %p143 = scmp.eq.s32.totalorder %s18, 0
    %p144 = por %p142, %p143
    %p145 = scmp.ne.s32.totalorder %s131, %s132
    %p146 = scmp.eq.s32.totalorder %s19, 1
    %p147 = por %p145, %p146
    %p149 = scmp.ne.s32.totalorder %s132, %s148
    %p150 = scmp.eq.s32.totalorder %s19, 0
    %p151 = por %p149, %p150
    %s153 = sadd.s32 %s152, 1
    %p156 = scmp.eq.s32.totalorder %s13, 1
    %p157 = scmp.ne.s32.totalorder %s152, %s154
    %p158 = scmp.eq.s32.totalorder %s13, 0
    %p159 = por %p157, %p158
    %p160 = scmp.ne.s32.totalorder %s152, %s154
    %p161 = scmp.eq.s32.totalorder %s18, 1
    %p162 = por %p160, %p161
    %p163 = scmp.ne.s32.totalorder %s154, %s155
    %p164 = scmp.eq.s32.totalorder %s18, 0
    %p165 = por %p163, %p164
    %p166 = scmp.ne.s32.totalorder %s154, %s155
    %p167 = scmp.eq.s32.totalorder %s19, 1
    %p168 = por %p166, %p167
    %p170 = scmp.ne.s32.totalorder %s155, %s169
    %p171 = scmp.eq.s32.totalorder %s19, 0
    %p172 = por %p170, %p171
    %s174 = sadd.s32 %s173, 1
    %p177 = scmp.eq.s32.totalorder %s13, 1
    %p178 = scmp.ne.s32.totalorder %s173, %s175
    %p179 = scmp.eq.s32.totalorder %s13, 0
    %p180 = por %p178, %p179
    %p181 = scmp.ne.s32.totalorder %s173, %s175
    %p182 = scmp.eq.s32.totalorder %s18, 1
    %p183 = por %p181, %p182
    %p184 = scmp.ne.s32.totalorder %s175, %s176
    %p185 = scmp.eq.s32.totalorder %s18, 0
    %p186 = por %p184, %p185
    %p187 = scmp.ne.s32.totalorder %s175, %s176
    %p188 = scmp.eq.s32.totalorder %s19, 1
    %p189 = por %p187, %p188
    %p191 = scmp.ne.s32.totalorder %s176, %s190
    %p192 = scmp.eq.s32.totalorder %s19, 0
    %p193 = por %p191, %p192
    %p194 = scmp.le.s32.totalorder 1, %s13
    %p195 = scmp.lt.s32.totalorder %s13, 3
    %p196 = pnand %p194, %p195
    %p197 = pneg %p196
    // Predicated region
    $region9: #{projection_conv_forward.4} parent=5 // pred_check
      _
    $region10: #{projection_conv_forward.4} parent=5 // pred_check_branch
      %199 = sbr.rel (%p196) target = $region12
    $region11: #{projection_conv_forward.4} parent=5 // pred_region
      %s200 = ssub.s32 %s13, 1
      // Predicated region
      $region13: #{projection_conv_forward.4} parent=11 // pred_check
        %p201 = pneg %p74
      $region14: #{projection_conv_forward.4} parent=11 // pred_check_branch
        %203 = sbr.rel (%p201) target = $region16
      $region15: #{projection_conv_forward.4} parent=11 // pred_region
        _
      $region16: #{projection_conv_forward.4} parent=11 // pred_fallthru
        _
      // Predicated region
      $region17: #{projection_conv_forward.4} parent=11 // pred_check
        %p204 = pneg %p95
      $region18: #{projection_conv_forward.4} parent=11 // pred_check_branch
        %206 = sbr.rel (%p204) target = $region20
      $region19: #{projection_conv_forward.4} parent=11 // pred_region
        _
      $region20: #{projection_conv_forward.4} parent=11 // pred_fallthru
        _
      // Predicated region
      $region21: #{projection_conv_forward.4} parent=11 // pred_check
        %p207 = pneg %p116
      $region22: #{projection_conv_forward.4} parent=11 // pred_check_branch
        %209 = sbr.rel (%p207) target = $region24
      $region23: #{projection_conv_forward.4} parent=11 // pred_region
        _
      $region24: #{projection_conv_forward.4} parent=11 // pred_fallthru
        _
    $region12: #{projection_conv_forward.4} parent=5 // pred_fallthru
      _
    %p210 = scmp.lt.s32.totalorder %s13, 2
    // Predicated region
    $region25: #{projection_conv_forward.4} parent=5 // pred_check
      %p211 = pneg %p210
    $region26: #{projection_conv_forward.4} parent=5 // pred_check_branch
      %213 = sbr.rel (%p211) target = $region28
    $region27: #{projection_conv_forward.4} parent=5 // pred_region
      // Predicated region
      $region29: #{projection_conv_forward.4} parent=27 // pred_check
        %p214 = pneg %p47
      $region30: #{projection_conv_forward.4} parent=27 // pred_check_branch
        %216 = sbr.rel (%p214) target = $region32
      $region31: #{projection_conv_forward.4} parent=27 // pred_region
        %s217 = smul.u32 2, %s21
        %p218 = scmp.lt.s32.totalorder %s20, 1
        %s219 = scalar_select %p218, %s20, 1
        %p220 = scmp.lt.s32.totalorder %s217, 1
        %s221 = scalar_select %p220, %s217, 1
        %s222 = smul.addr %s219, 8
        %s223 = sadd.s32 %s221, %s222
        %s224 = smul.addr %s223, 8
        %s225 = scalar_lea.vmem %s0, %s224
        %s226 = smul.u32 2, %s21
      $region32: #{projection_conv_forward.4} parent=27 // pred_fallthru
        _
    $region28: #{projection_conv_forward.4} parent=5 // pred_fallthru
      _
    %p227 = scmp.le.s32.totalorder 1, %s13
    %p228 = scmp.lt.s32.totalorder %s13, 3
    %p229 = pnand %p227, %p228
    %p230 = pneg %p229
    // Predicated region
    $region33: #{projection_conv_forward.4} parent=5 // pred_check
      _
    $region34: #{projection_conv_forward.4} parent=5 // pred_check_branch
      %232 = sbr.rel (%p229) target = $region36
    $region35: #{projection_conv_forward.4} parent=5 // pred_region
      %s233 = ssub.s32 %s13, 1
      %s234 = smul.u32 2, %s23
      %p235 = scmp.lt.s32.totalorder %s22, 1
      %s236 = scalar_select %p235, %s22, 1
      %p237 = scmp.lt.s32.totalorder %s234, 1
      %s238 = scalar_select %p237, %s234, 1
      %s239 = smul.addr %s236, 8
      %s240 = sadd.s32 %s238, %s239
      %s241 = smul.addr %s240, 8
      %s242 = scalar_lea.vmem %s0, %s241
      %p243 = pneg %p53
      %p244 = pneg %p50
      %p245 = pneg %p74
      %p246 = pneg %p71
      %p247 = pneg %p95
      %p248 = pneg %p92
      %p249 = pneg %p116
      %p250 = pneg %p113
      %p251 = pneg %p144
      %p252 = pneg %p141
      %s253 = smul.u32 2, %s23
      %p254 = scmp.lt.s32.totalorder %s22, 1
      %s255 = scalar_select %p254, %s22, 1
      %p256 = scmp.lt.s32.totalorder %s253, 1
      %s257 = scalar_select %p256, %s253, 1
      %s258 = smul.addr %s255, 8
      %s259 = sadd.s32 %s257, %s258
      %s260 = smul.addr %s259, 8
      %s261 = scalar_lea.vmem %s4, %s260
      %p262 = pneg %p165
      %p263 = pneg %p162
      %p264 = pneg %p186
      %p265 = pneg %p183
      %s266 = smul.u32 2, %s23
      %p267 = scmp.lt.s32.totalorder %s22, 1
      %s268 = scalar_select %p267, %s22, 1
      %p269 = scmp.lt.s32.totalorder %s266, 1
      %s270 = scalar_select %p269, %s266, 1
      %s271 = smul.addr %s268, 8
      %s272 = sadd.s32 %s270, %s271
      %s273 = smul.addr %s272, 8
      %s274 = scalar_lea.vmem %s0, %s273
      %s275 = smul.u32 2, %s23
      %s276 = smul.u32 2, %s23
      %p277 = scmp.lt.s32.totalorder %s22, 1
      %s278 = scalar_select %p277, %s22, 1
      %p279 = scmp.lt.s32.totalorder %s276, 1
      %s280 = scalar_select %p279, %s276, 1
      %s281 = smul.addr %s278, 8
      %s282 = sadd.s32 %s280, %s281
      %s283 = smul.addr %s282, 8
      %s284 = scalar_lea.vmem %s4, %s283
      %s285 = smul.u32 2, %s23
      %p286 = scmp.eq.s32.totalorder %s22, 0
      %p287 = scmp.eq.s32.totalorder %s23, 0
      %p288 = pnand %p286, %p287
      %p289 = pneg %p288
      // Predicated region
      $region37: #{projection_conv_forward.4} parent=35 // pred_check
        _
      $region38: #{projection_conv_forward.4} parent=35 // pred_check_branch
        %291 = sbr.rel (%p288) target = $region40
      $region39: #{projection_conv_forward.4} parent=35 // pred_region
        %vm292 = vcmask 7168
        %293 = vst.msk [vmem:[%s5] sm:$0xff] %vm292, 0.0
        %294 = vst.msk [vmem:[%s5 + $0x8] sm:$0xff] %vm292, 0.0
        %295 = vst.msk [vmem:[%s5 + $0x10] sm:$0xff] %vm292, 0.0
        %296 = vst.msk [vmem:[%s5 + $0x18] sm:$0xff] %vm292, 0.0
        %297 = vst.msk [vmem:[%s6] sm:$0xff] %vm292, 0.0
        %298 = vst.msk [vmem:[%s6 + $0x8] sm:$0xff] %vm292, 0.0
        %299 = vst.msk [vmem:[%s6 + $0x10] sm:$0xff] %vm292, 0.0
        %300 = vst.msk [vmem:[%s6 + $0x18] sm:$0xff] %vm292, 0.0
      $region40: #{projection_conv_forward.4} parent=35 // pred_fallthru
        _
      %v301 = vld [vmem:[%s274] sm:$0xff]
      %v302 = vld [vmem:[%s274 + $0x8] sm:$0xff]
      %v303 = vld [vmem:[%s274 + $0x10] sm:$0xff]
      %v304 = vld [vmem:[%s274 + $0x18] sm:$0xff]
      %v305 = vld [vmem:[%s274 + $0x20] sm:$0xff]
      %v306 = vld [vmem:[%s274 + $0x28] sm:$0xff]
      %v307 = vld [vmem:[%s274 + $0x30] sm:$0xff]
      %v308 = vld [vmem:[%s274 + $0x38] sm:$0xff]
      %v309 = vld [vmem:[%s2] sm:$0xff]
      %v310 = vld [vmem:[%s2 + $0x8] sm:$0xff]
      %v311 = vld [vmem:[%s2 + $0x10] sm:$0xff]
      %v312 = vld [vmem:[%s2 + $0x18] sm:$0xff]
      %314 = vset.pattern.permute.xlu0 0
      %315 = vperm.xlu0 %314, %v309
      %v316 = vpop.permute.xlu0 %315
      %319 = vset.pattern.permute.xlu0 0
      %320 = vperm.xlu0 %319, %v310
      %v321 = vpop.permute.xlu0 %320
      %324 = vset.pattern.permute.xlu0 0
      %325 = vperm.xlu0 %324, %v311
      %v326 = vpop.permute.xlu0 %325
      %329 = vset.pattern.permute.xlu0 0
      %330 = vperm.xlu0 %329, %v312
      %v331 = vpop.permute.xlu0 %330
      %v333 = vmul.f32 %v301, %v316
      %v334 = vmul.f32 %v302, %v316
      %v335 = vmul.f32 %v303, %v321
      %v336 = vmul.f32 %v304, %v321
      %v337 = vmul.f32 %v305, %v326
      %v338 = vmul.f32 %v306, %v326
      %v339 = vmul.f32 %v307, %v331
      %v340 = vmul.f32 %v308, %v331
      %v341 = vld [vmem:[%s3] sm:$0xff]
      %v342 = vld [vmem:[%s3 + $0x8] sm:$0xff]
      %v343 = vld [vmem:[%s3 + $0x10] sm:$0xff]
      %v344 = vld [vmem:[%s3 + $0x18] sm:$0xff]
      %346 = vset.pattern.permute.xlu0 0
      %347 = vperm.xlu0 %346, %v341
      %v348 = vpop.permute.xlu0 %347
      %351 = vset.pattern.permute.xlu0 0
      %352 = vperm.xlu0 %351, %v342
      %v353 = vpop.permute.xlu0 %352
      %356 = vset.pattern.permute.xlu0 0
      %357 = vperm.xlu0 %356, %v343
      %v358 = vpop.permute.xlu0 %357
      %361 = vset.pattern.permute.xlu0 0
      %362 = vperm.xlu0 %361, %v344
      %v363 = vpop.permute.xlu0 %362
      %v365 = vadd.f32 %v333, %v348
      %v366 = vadd.f32 %v334, %v348
      %v367 = vadd.f32 %v335, %v353
      %v368 = vadd.f32 %v336, %v353
      %v369 = vadd.f32 %v337, %v358
      %v370 = vadd.f32 %v338, %v358
      %v371 = vadd.f32 %v339, %v363
      %v372 = vadd.f32 %v340, %v363
      %v373 = vmax.f32 %v365, 0.0
      %v374 = vmax.f32 %v366, 0.0
      %v375 = vmax.f32 %v367, 0.0
      %v376 = vmax.f32 %v368, 0.0
      %v377 = vmax.f32 %v369, 0.0
      %v378 = vmax.f32 %v370, 0.0
      %v379 = vmax.f32 %v371, 0.0
      %v380 = vmax.f32 %v372, 0.0
      %v381 = vld [vmem:[%s1] sm:$0xff]
      %v382 = vld [vmem:[%s1 + $0x8] sm:$0xff]
      %v383 = vld [vmem:[%s1 + $0x10] sm:$0xff]
      %v384 = vld [vmem:[%s1 + $0x18] sm:$0xff]
      %vm385 = vcmask 261120
      %v387 = vsel %vm385, %v381, 0
      %v390 = vsel %vm385, %v382, 0
      %v393 = vsel %vm385, %v383, 0
      %v396 = vsel %vm385, %v384, 0
      %398 = vmatpush.msra.mxu0 0.0
      %399 = vmatpush.msra.mxu0 0.0
      %400 = vmatpush.msra.mxu0 0.0
      %401 = vmatpush.msra.mxu0 0.0
      %402 = vmatpush.msra.mxu0 0.0
      %403 = vmatpush.msra.mxu0 0.0
      %404 = vmatpush.msra.mxu0 0.0
      %405 = vmatpush.msra.mxu0 0.0
      %406 = vmatpush.msra.mxu0 0.0
      %407 = vmatpush.msra.mxu0 0.0
      %408 = vmatpush.msra.mxu0 0.0
      %409 = vmatpush.msra.mxu0 0.0
      %410 = vmatpush.msra.mxu0 %v379
      %411 = vmatpush.msra.mxu0 %v377
      %412 = vmatpush.msra.mxu0 %v375
      %413 = vmatpush.msra.mxu0 %v373
      %414 = vmatmul.f32.gmra.mxu0 %v387
      %v415 = vpop.f32.mrf.mxu0
      %v416 = vadd.f32 0.0, %v415
      %417 = vmatmul.f32.gmra.mxu0 %v390
      %v418 = vpop.f32.mrf.mxu0
      %v419 = vadd.f32 0.0, %v418
      %420 = vmatmul.f32.gmra.mxu0 %v393
      %v421 = vpop.f32.mrf.mxu0
      %v422 = vadd.f32 0.0, %v421
      %423 = vmatmul.f32.gmra.mxu0 %v396
      %v424 = vpop.f32.mrf.mxu0
      %v425 = vadd.f32 0.0, %v424
      %426 = vdwg.mxu0
      %427 = vmatpush.msra.mxu0 0.0
      %428 = vmatpush.msra.mxu0 0.0
      %429 = vmatpush.msra.mxu0 0.0
      %430 = vmatpush.msra.mxu0 0.0
      %431 = vmatpush.msra.mxu0 0.0
      %432 = vmatpush.msra.mxu0 0.0
      %433 = vmatpush.msra.mxu0 0.0
      %434 = vmatpush.msra.mxu0 0.0
      %435 = vmatpush.msra.mxu0 0.0
      %436 = vmatpush.msra.mxu0 0.0
      %437 = vmatpush.msra.mxu0 0.0
      %438 = vmatpush.msra.mxu0 0.0
      %439 = vmatpush.msra.mxu0 %v380
      %440 = vmatpush.msra.mxu0 %v378
      %441 = vmatpush.msra.mxu0 %v376
      %442 = vmatpush.msra.mxu0 %v374
      %443 = vmatmul.f32.gmra.mxu0 %v387
      %v444 = vpop.f32.mrf.mxu0
      %v445 = vadd.f32 0.0, %v444
      %446 = vmatmul.f32.gmra.mxu0 %v390
      %v447 = vpop.f32.mrf.mxu0
      %v448 = vadd.f32 0.0, %v447
      %449 = vmatmul.f32.gmra.mxu0 %v393
      %v450 = vpop.f32.mrf.mxu0
      %v451 = vadd.f32 0.0, %v450
      %452 = vmatmul.f32.gmra.mxu0 %v396
      %v453 = vpop.f32.mrf.mxu0
      %v454 = vadd.f32 0.0, %v453
      %455 = vdwg.mxu0
      %456 = vst [vmem:[%s284] sm:$0xff] %v416
      %457 = vst [vmem:[%s284 + $0x8] sm:$0xff] %v445
      %458 = vst [vmem:[%s284 + $0x10] sm:$0xff] %v419
      %459 = vst [vmem:[%s284 + $0x18] sm:$0xff] %v448
      %460 = vst [vmem:[%s284 + $0x20] sm:$0xff] %v422
      %461 = vst [vmem:[%s284 + $0x28] sm:$0xff] %v451
      %462 = vst [vmem:[%s284 + $0x30] sm:$0xff] %v425
      %463 = vst [vmem:[%s284 + $0x38] sm:$0xff] %v454
      %v464 = vld [vmem:[%s5] sm:$0xff]
      %v465 = vld [vmem:[%s5 + $0x8] sm:$0xff]
      %v466 = vld [vmem:[%s5 + $0x10] sm:$0xff]
      %v467 = vld [vmem:[%s5 + $0x18] sm:$0xff]
      %v468 = vadd.f32 %v416, %v445
      %469 = vadd.xlane.f32.xlu0 %v468
      %v470 = vpop.xlane.xlu0 %469
      %v471 = vadd.f32 %v419, %v448
      %472 = vadd.xlane.f32.xlu0 %v471
      %v473 = vpop.xlane.xlu0 %472
      %v474 = vadd.f32 %v422, %v451
      %475 = vadd.xlane.f32.xlu0 %v474
      %v476 = vpop.xlane.xlu0 %475
      %v477 = vadd.f32 %v425, %v454
      %478 = vadd.xlane.f32.xlu0 %v477
      %v479 = vpop.xlane.xlu0 %478
      %v480 = vadd.f32 %v464, %v470
      %v481 = vadd.f32 %v465, %v473
      %v482 = vadd.f32 %v466, %v476
      %v483 = vadd.f32 %v467, %v479
      %vm484 = vcmask 7168
      %485 = vst.msk [vmem:[%s5] sm:$0xff] %vm484, %v480
      %486 = vst.msk [vmem:[%s5 + $0x8] sm:$0xff] %vm484, %v481
      %487 = vst.msk [vmem:[%s5 + $0x10] sm:$0xff] %vm484, %v482
      %488 = vst.msk [vmem:[%s5 + $0x18] sm:$0xff] %vm484, %v483
      %v489 = vld [vmem:[%s6] sm:$0xff]
      %v490 = vld [vmem:[%s6 + $0x8] sm:$0xff]
      %v491 = vld [vmem:[%s6 + $0x10] sm:$0xff]
      %v492 = vld [vmem:[%s6 + $0x18] sm:$0xff]
      %v493 = vmul.f32 %v416, %v416
      %v494 = vmul.f32 %v445, %v445
      %v495 = vmul.f32 %v419, %v419
      %v496 = vmul.f32 %v448, %v448
      %v497 = vmul.f32 %v422, %v422
      %v498 = vmul.f32 %v451, %v451
      %v499 = vmul.f32 %v425, %v425
      %v500 = vmul.f32 %v454, %v454
      %v501 = vadd.f32 %v493, %v494
      %502 = vadd.xlane.f32.xlu0 %v501
      %v503 = vpop.xlane.xlu0 %502
      %v504 = vadd.f32 %v495, %v496
      %505 = vadd.xlane.f32.xlu0 %v504
      %v506 = vpop.xlane.xlu0 %505
      %v507 = vadd.f32 %v497, %v498
      %508 = vadd.xlane.f32.xlu0 %v507
      %v509 = vpop.xlane.xlu0 %508
      %v510 = vadd.f32 %v499, %v500
      %511 = vadd.xlane.f32.xlu0 %v510
      %v512 = vpop.xlane.xlu0 %511
      %v513 = vadd.f32 %v489, %v503
      %v514 = vadd.f32 %v490, %v506
      %v515 = vadd.f32 %v491, %v509
      %v516 = vadd.f32 %v492, %v512
      %517 = vst.msk [vmem:[%s6] sm:$0xff] %vm484, %v513
      %518 = vst.msk [vmem:[%s6 + $0x8] sm:$0xff] %vm484, %v514
      %519 = vst.msk [vmem:[%s6 + $0x10] sm:$0xff] %vm484, %v515
      %520 = vst.msk [vmem:[%s6 + $0x18] sm:$0xff] %vm484, %v516
      %s521 = smul.u32 2, %s23
      %p522 = scmp.lt.s32.totalorder %s22, 1
      %s523 = scalar_select %p522, %s22, 1
      %p524 = scmp.lt.s32.totalorder %s521, 1
      %s525 = scalar_select %p524, %s521, 1
      %s526 = smul.addr %s523, 8
      %s527 = sadd.s32 %s525, %s526
      %s528 = smul.addr %s527, 8
      %s529 = scalar_lea.vmem %s4, %s528
      // Predicated region
      $region41: #{projection_conv_forward.4} parent=35 // pred_check
        %p530 = pneg %p141
      $region42: #{projection_conv_forward.4} parent=35 // pred_check_branch
        %532 = sbr.rel (%p530) target = $region44
      $region43: #{projection_conv_forward.4} parent=35 // pred_region
        %s533 = smul.u32 2, %s23
      $region44: #{projection_conv_forward.4} parent=35 // pred_fallthru
        _
      // Predicated region
      $region45: #{projection_conv_forward.4} parent=35 // pred_check
        %p534 = pneg %p162
      $region46: #{projection_conv_forward.4} parent=35 // pred_check_branch
        %536 = sbr.rel (%p534) target = $region48
      $region47: #{projection_conv_forward.4} parent=35 // pred_region
        _
      $region48: #{projection_conv_forward.4} parent=35 // pred_fallthru
        _
      // Predicated region
      $region49: #{projection_conv_forward.4} parent=35 // pred_check
        %p537 = pneg %p183
      $region50: #{projection_conv_forward.4} parent=35 // pred_check_branch
        %539 = sbr.rel (%p537) target = $region52
      $region51: #{projection_conv_forward.4} parent=35 // pred_region
        _
      $region52: #{projection_conv_forward.4} parent=35 // pred_fallthru
        _
      // Predicated region
      $region53: #{projection_conv_forward.4} parent=35 // pred_check
        %p540 = pneg %p162
      $region54: #{projection_conv_forward.4} parent=35 // pred_check_branch
        %542 = sbr.rel (%p540) target = $region56
      $region55: #{projection_conv_forward.4} parent=35 // pred_region
        _
      $region56: #{projection_conv_forward.4} parent=35 // pred_fallthru
        _
      // Predicated region
      $region57: #{projection_conv_forward.4} parent=35 // pred_check
        %p543 = pneg %p183
      $region58: #{projection_conv_forward.4} parent=35 // pred_check_branch
        %545 = sbr.rel (%p543) target = $region60
      $region59: #{projection_conv_forward.4} parent=35 // pred_region
        _
      $region60: #{projection_conv_forward.4} parent=35 // pred_fallthru
        _
    $region36: #{projection_conv_forward.4} parent=5 // pred_fallthru
      _
    %p546 = scmp.le.s32.totalorder 2, %s13
    // Predicated region
    $region61: #{projection_conv_forward.4} parent=5 // pred_check
      %p547 = pneg %p546
    $region62: #{projection_conv_forward.4} parent=5 // pred_check_branch
      %549 = sbr.rel (%p547) target = $region64
    $region63: #{projection_conv_forward.4} parent=5 // pred_region
      %s550 = ssub.s32 %s13, 2
      // Predicated region
      $region65: #{projection_conv_forward.4} parent=63 // pred_check
        %p551 = pneg %p147
      $region66: #{projection_conv_forward.4} parent=63 // pred_check_branch
        %553 = sbr.rel (%p551) target = $region68
      $region67: #{projection_conv_forward.4} parent=63 // pred_region
        %s554 = smul.u32 2, %s25
        %p555 = scmp.lt.s32.totalorder %s24, 1
        %s556 = scalar_select %p555, %s24, 1
        %p557 = scmp.lt.s32.totalorder %s554, 1
        %s558 = scalar_select %p557, %s554, 1
        %s559 = smul.addr %s556, 8
        %s560 = sadd.s32 %s558, %s559
        %s561 = smul.addr %s560, 8
        %s562 = scalar_lea.vmem %s4, %s561
      $region68: #{projection_conv_forward.4} parent=63 // pred_fallthru
        _
    $region64: #{projection_conv_forward.4} parent=5 // pred_fallthru
      _
  $region6: #{projection_conv_forward.4} parent=0 // loop_footer
    %s17 = sadd.s32 1, %s13
  $region7: #{projection_conv_forward.4} parent=0 // loop_footer_branch
    %12 = sbr.rel target = $region3
  $region8: #{projection_conv_forward.4} parent=0 // loop_exit
    _

// kernel: projection_conv_forward.3
$region0: #{projection_conv_forward.3}
  #allocation0 [shape = 'u32[]', space=smem, size = 0x4, offset = 0x4, fixed_abs, tag = 'smem constant byte address 0x4 - core index']
  #allocation1 [shape = 'u32[72,128]{1,0:T(1,128)}', space=vmem, size = 0x9000, scoped, tag = 'internal scratch']
  %s0 = inlined_call_operand.vmem [shape: f32[2,4,256], index: 0, kind: input, shape index: {}]
  %s1 = inlined_call_operand.vmem [shape: f32[32,4], index: 1, kind: input, shape index: {}]
  %s2 = inlined_call_operand.vmem [shape: f32[2,32,256], index: 2, kind: output, shape index: {0}]
  %s3 = inlined_call_operand.vmem [shape: f32[32,1], index: 3, kind: output, shape index: {1}]
  %s4 = inlined_call_operand.vmem [shape: f32[32,1], index: 4, kind: output, shape index: {2}]
  %5 = xla_tuple %s2, %s3, %s4
  %s6 = sld [smem:[#allocation0]]
  $region61: #{projection_conv_forward.3} parent=0
    _
  %s8 = ssub.s32 1, %s6
  %s9 = scalar_select 0, %s8, %s6
  loop: start=0, step=1, limit=4
  $region2: #{projection_conv_forward.3} parent=0 // loop_pre_header
    _
  $region3: #{projection_conv_forward.3} parent=0 // loop_header
    %s11 = sphi 0, %s15
    %p12 = scmp.ge.s32.totalorder %s11, 4
    %s18 = sphi 0, %s30
    %s19 = sphi 0, %s26
    %s20 = sphi 0, %s18
    %s21 = sphi 0, %s19
    %s22 = sphi 0, %s20
    %s23 = sphi 0, %s21
    %s35 = sphi 0, %s37
    %s38 = sphi 0, %s35
    %s39 = sphi 0, %s38
    %s55 = sphi 0, %s39
    %s59 = sphi 0, %s59
    %s61 = sphi 0, %s59
    %s62 = sphi 0, %s61
    %s76 = sphi 0, %s62
    %s84 = sphi 0, %s86
    %s87 = sphi 0, %s84
    %s88 = sphi 0, %s87
    %s104 = sphi 0, %s88
    %s108 = sphi 0, %s108
    %s110 = sphi 0, %s108
    %s111 = sphi 0, %s110
    %s125 = sphi 0, %s111
    %s129 = sphi 0, %s129
    %s131 = sphi 0, %s129
    %s132 = sphi 0, %s131
    %s146 = sphi 0, %s132
  $region4: #{projection_conv_forward.3} parent=0 // loop_header_branch
    %14 = sbr.rel (%p12) target = $region8
  $region5: #{projection_conv_forward.3} parent=0 // loop_body
    %s16 = ssub.s32 %s11, 1
    %s17 = ssub.s32 %s11, 2
    %s24 = sadd.s32 1, %s19
    %p25 = scmp.ge.s32.totalorder %s24, 1
    %s26 = scalar_select %p25, 0, %s24
    %s27 = sadd.s32 1, %s18
    %s28 = scalar_select %p25, %s27, %s18
    %p29 = scmp.ge.s32.totalorder %s28, 2
    %s30 = scalar_select %p29, 0, %s28
    %s31 = ssub.s32 %s18, %s30
    %s32 = ssub.s32 %s19, %s26
    %s33 = sor.u32 %s31, %s32
    %p34 = scmp.eq.s32.totalorder %s33, 0
    %s36 = sadd.s32 %s35, 1
    %s37 = scalar_select %p34, %s35, %s36
    %p40 = pneg %p34
    %p41 = scmp.eq.s32.totalorder %s11, 1
    %p42 = por %p40, %p41
    %p43 = scmp.ne.s32.totalorder %s35, %s38
    %p44 = scmp.eq.s32.totalorder %s11, 0
    %p45 = por %p43, %p44
    %p46 = scmp.ne.s32.totalorder %s35, %s38
    %p47 = scmp.eq.s32.totalorder %s16, 1
    %p48 = por %p46, %p47
    %p49 = scmp.ne.s32.totalorder %s38, %s39
    %p50 = scmp.eq.s32.totalorder %s16, 0
    %p51 = por %p49, %p50
    %p52 = scmp.ne.s32.totalorder %s38, %s39
    %p53 = scmp.eq.s32.totalorder %s17, 1
    %p54 = por %p52, %p53
    %p56 = scmp.ne.s32.totalorder %s39, %s55
    %p57 = scmp.eq.s32.totalorder %s17, 0
    %p58 = por %p56, %p57
    %s60 = sadd.s32 %s59, 1
    %p63 = scmp.eq.s32.totalorder %s11, 1
    %p64 = scmp.ne.s32.totalorder %s59, %s61
    %p65 = scmp.eq.s32.totalorder %s11, 0
    %p66 = por %p64, %p65
    %p67 = scmp.ne.s32.totalorder %s59, %s61
    %p68 = scmp.eq.s32.totalorder %s16, 1
    %p69 = por %p67, %p68
    %p70 = scmp.ne.s32.totalorder %s61, %s62
    %p71 = scmp.eq.s32.totalorder %s16, 0
    %p72 = por %p70, %p71
    %p73 = scmp.ne.s32.totalorder %s61, %s62
    %p74 = scmp.eq.s32.totalorder %s17, 1
    %p75 = por %p73, %p74
    %p77 = scmp.ne.s32.totalorder %s62, %s76
    %p78 = scmp.eq.s32.totalorder %s17, 0
    %p79 = por %p77, %p78
    %s80 = ssub.s32 %s18, %s30
    %s81 = ssub.s32 %s19, %s26
    %s82 = sor.u32 %s80, %s81
    %p83 = scmp.eq.s32.totalorder %s82, 0
    %s85 = sadd.s32 %s84, 1
    %s86 = scalar_select %p83, %s84, %s85
    %p89 = pneg %p83
    %p90 = scmp.eq.s32.totalorder %s11, 1
    %p91 = por %p89, %p90
    %p92 = scmp.ne.s32.totalorder %s84, %s87
    %p93 = scmp.eq.s32.totalorder %s11, 0
    %p94 = por %p92, %p93
    %p95 = scmp.ne.s32.totalorder %s84, %s87
    %p96 = scmp.eq.s32.totalorder %s16, 1
    %p97 = por %p95, %p96
    %p98 = scmp.ne.s32.totalorder %s87, %s88
    %p99 = scmp.eq.s32.totalorder %s16, 0
    %p100 = por %p98, %p99
    %p101 = scmp.ne.s32.totalorder %s87, %s88
    %p102 = scmp.eq.s32.totalorder %s17, 1
    %p103 = por %p101, %p102
    %p105 = scmp.ne.s32.totalorder %s88, %s104
    %p106 = scmp.eq.s32.totalorder %s17, 0
    %p107 = por %p105, %p106
    %s109 = sadd.s32 %s108, 1
    %p112 = scmp.eq.s32.totalorder %s11, 1
    %p113 = scmp.ne.s32.totalorder %s108, %s110
    %p114 = scmp.eq.s32.totalorder %s11, 0
    %p115 = por %p113, %p114
    %p116 = scmp.ne.s32.totalorder %s108, %s110
    %p117 = scmp.eq.s32.totalorder %s16, 1
    %p118 = por %p116, %p117
    %p119 = scmp.ne.s32.totalorder %s110, %s111
    %p120 = scmp.eq.s32.totalorder %s16, 0
    %p121 = por %p119, %p120
    %p122 = scmp.ne.s32.totalorder %s110, %s111
    %p123 = scmp.eq.s32.totalorder %s17, 1
    %p124 = por %p122, %p123
    %p126 = scmp.ne.s32.totalorder %s111, %s125
    %p127 = scmp.eq.s32.totalorder %s17, 0
    %p128 = por %p126, %p127
    %s130 = sadd.s32 %s129, 1
    %p133 = scmp.eq.s32.totalorder %s11, 1
    %p134 = scmp.ne.s32.totalorder %s129, %s131
    %p135 = scmp.eq.s32.totalorder %s11, 0
    %p136 = por %p134, %p135
    %p137 = scmp.ne.s32.totalorder %s129, %s131
    %p138 = scmp.eq.s32.totalorder %s16, 1
    %p139 = por %p137, %p138
    %p140 = scmp.ne.s32.totalorder %s131, %s132
    %p141 = scmp.eq.s32.totalorder %s16, 0
    %p142 = por %p140, %p141
    %p143 = scmp.ne.s32.totalorder %s131, %s132
    %p144 = scmp.eq.s32.totalorder %s17, 1
    %p145 = por %p143, %p144
    %p147 = scmp.ne.s32.totalorder %s132, %s146
    %p148 = scmp.eq.s32.totalorder %s17, 0
    %p149 = por %p147, %p148
    %p150 = scmp.le.s32.totalorder 1, %s11
    %p151 = scmp.lt.s32.totalorder %s11, 3
    %p152 = pnand %p150, %p151
    %p153 = pneg %p152
    // Predicated region
    $region9: #{projection_conv_forward.3} parent=5 // pred_check
      _
    $region10: #{projection_conv_forward.3} parent=5 // pred_check_branch
      %155 = sbr.rel (%p152) target = $region12
    $region11: #{projection_conv_forward.3} parent=5 // pred_region
      %s156 = ssub.s32 %s11, 1
      // Predicated region
      $region13: #{projection_conv_forward.3} parent=11 // pred_check
        %p157 = pneg %p72
      $region14: #{projection_conv_forward.3} parent=11 // pred_check_branch
        %159 = sbr.rel (%p157) target = $region16
      $region15: #{projection_conv_forward.3} parent=11 // pred_region
        _
      $region16: #{projection_conv_forward.3} parent=11 // pred_fallthru
        _
    $region12: #{projection_conv_forward.3} parent=5 // pred_fallthru
      _
    %p160 = scmp.lt.s32.totalorder %s11, 2
    // Predicated region
    $region17: #{projection_conv_forward.3} parent=5 // pred_check
      %p161 = pneg %p160
    $region18: #{projection_conv_forward.3} parent=5 // pred_check_branch
      %163 = sbr.rel (%p161) target = $region20
    $region19: #{projection_conv_forward.3} parent=5 // pred_region
      // Predicated region
      $region21: #{projection_conv_forward.3} parent=19 // pred_check
        %p164 = pneg %p45
      $region22: #{projection_conv_forward.3} parent=19 // pred_check_branch
        %166 = sbr.rel (%p164) target = $region24
      $region23: #{projection_conv_forward.3} parent=19 // pred_region
        %s167 = smul.u32 2, %s19
        %p168 = scmp.lt.s32.totalorder %s18, 1
        %s169 = scalar_select %p168, %s18, 1
        %p170 = scmp.lt.s32.totalorder %s167, 1
        %s171 = scalar_select %p170, %s167, 1
        %s172 = smul.addr %s169, 2
        %s173 = sadd.s32 %s171, %s172
        %s174 = smul.addr %s173, 4
        %s175 = scalar_lea.vmem %s0, %s174
        %s176 = smul.u32 2, %s19
      $region24: #{projection_conv_forward.3} parent=19 // pred_fallthru
        _
    $region20: #{projection_conv_forward.3} parent=5 // pred_fallthru
      _
    %p177 = scmp.le.s32.totalorder 1, %s11
    %p178 = scmp.lt.s32.totalorder %s11, 3
    %p179 = pnand %p177, %p178
    %p180 = pneg %p179
    // Predicated region
    $region25: #{projection_conv_forward.3} parent=5 // pred_check
      _
    $region26: #{projection_conv_forward.3} parent=5 // pred_check_branch
      %182 = sbr.rel (%p179) target = $region28
    $region27: #{projection_conv_forward.3} parent=5 // pred_region
      %s183 = ssub.s32 %s11, 1
      %s184 = smul.u32 2, %s21
      %p185 = scmp.lt.s32.totalorder %s20, 1
      %s186 = scalar_select %p185, %s20, 1
      %p187 = scmp.lt.s32.totalorder %s184, 1
      %s188 = scalar_select %p187, %s184, 1
      %s189 = smul.addr %s186, 2
      %s190 = sadd.s32 %s188, %s189
      %s191 = smul.addr %s190, 4
      %s192 = scalar_lea.vmem %s0, %s191
      %p193 = pneg %p51
      %p194 = pneg %p48
      %p195 = pneg %p72
      %p196 = pneg %p69
      %p197 = pneg %p100
      %p198 = pneg %p97
      %s199 = smul.u32 2, %s21
      %p200 = scmp.lt.s32.totalorder %s20, 1
      %s201 = scalar_select %p200, %s20, 1
      %p202 = scmp.lt.s32.totalorder %s199, 1
      %s203 = scalar_select %p202, %s199, 1
      %s204 = smul.addr %s201, 8
      %s205 = sadd.s32 %s203, %s204
      %s206 = smul.addr %s205, 8
      %s207 = scalar_lea.vmem %s2, %s206
      %p208 = pneg %p121
      %p209 = pneg %p118
      %p210 = pneg %p142
      %p211 = pneg %p139
      %s212 = smul.u32 2, %s21
      %p213 = scmp.lt.s32.totalorder %s20, 1
      %s214 = scalar_select %p213, %s20, 1
      %p215 = scmp.lt.s32.totalorder %s212, 1
      %s216 = scalar_select %p215, %s212, 1
      %s217 = smul.addr %s214, 2
      %s218 = sadd.s32 %s216, %s217
      %s219 = smul.addr %s218, 4
      %s220 = scalar_lea.vmem %s0, %s219
      %s221 = smul.u32 2, %s21
      %s222 = smul.u32 2, %s21
      %p223 = scmp.lt.s32.totalorder %s20, 1
      %s224 = scalar_select %p223, %s20, 1
      %p225 = scmp.lt.s32.totalorder %s222, 1
      %s226 = scalar_select %p225, %s222, 1
      %s227 = smul.addr %s224, 8
      %s228 = sadd.s32 %s226, %s227
      %s229 = smul.addr %s228, 8
      %s230 = scalar_lea.vmem %s2, %s229
      %s231 = smul.u32 2, %s21
      %p232 = scmp.eq.s32.totalorder %s20, 0
      %p233 = scmp.eq.s32.totalorder %s21, 0
      %p234 = pnand %p232, %p233
      %p235 = pneg %p234
      // Predicated region
      $region29: #{projection_conv_forward.3} parent=27 // pred_check
        _
      $region30: #{projection_conv_forward.3} parent=27 // pred_check_branch
        %237 = sbr.rel (%p234) target = $region32
      $region31: #{projection_conv_forward.3} parent=27 // pred_region
        %vm238 = vcmask 7168
        %239 = vst.msk [vmem:[%s3] sm:$0xff] %vm238, 0.0
        %240 = vst.msk [vmem:[%s3 + $0x8] sm:$0xff] %vm238, 0.0
        %241 = vst.msk [vmem:[%s3 + $0x10] sm:$0xff] %vm238, 0.0
        %242 = vst.msk [vmem:[%s3 + $0x18] sm:$0xff] %vm238, 0.0
        %243 = vst.msk [vmem:[%s4] sm:$0xff] %vm238, 0.0
        %244 = vst.msk [vmem:[%s4 + $0x8] sm:$0xff] %vm238, 0.0
        %245 = vst.msk [vmem:[%s4 + $0x10] sm:$0xff] %vm238, 0.0
        %246 = vst.msk [vmem:[%s4 + $0x18] sm:$0xff] %vm238, 0.0
      $region32: #{projection_conv_forward.3} parent=27 // pred_fallthru
        _
      %v247 = vld [vmem:[%s1] sm:$0xff]
      %v248 = vld [vmem:[%s1 + $0x8] sm:$0xff]
      %v249 = vld [vmem:[%s1 + $0x10] sm:$0xff]
      %v250 = vld [vmem:[%s1 + $0x18] sm:$0xff]
      %v251 = vld [vmem:[%s220] sm:$0xff]
      %253 = vst [vmem:[#allocation1] ss:$2 sm:$0xff] %v251
      %v254 = vld.sshfl [vmem:[#allocation1] sm:$0xff pattern:$0x75316420]
      %v255 = vld.sshfl [vmem:[#allocation1 + $0x8] sm:$0xff pattern:$0x75316420]
      %vm256 = vcmask 31744
      %v258 = vsel %vm256, %v247, 0
      %v261 = vsel %vm256, %v248, 0
      %v264 = vsel %vm256, %v249, 0
      %v267 = vsel %vm256, %v250, 0
      %vm269 = vcmask 1043456
      %v270 = vsel %vm269, %v254, 0
      %v272 = vsel %vm269, %v255, 0
      %274 = vmatpush.msra.mxu0 0.0
      %275 = vmatpush.msra.mxu0 0.0
      %276 = vmatpush.msra.mxu0 0.0
      %277 = vmatpush.msra.mxu0 0.0
      %278 = vmatpush.msra.mxu0 0.0
      %279 = vmatpush.msra.mxu0 0.0
      %280 = vmatpush.msra.mxu0 0.0
      %281 = vmatpush.msra.mxu0 0.0
      %282 = vmatpush.msra.mxu0 0.0
      %283 = vmatpush.msra.mxu0 0.0
      %284 = vmatpush.msra.mxu0 0.0
      %285 = vmatpush.msra.mxu0 0.0
      %286 = vmatpush.msra.mxu0 0.0
      %287 = vmatpush.msra.mxu0 0.0
      %288 = vmatpush.msra.mxu0 0.0
      %289 = vmatpush.msra.mxu0 %v270
      %290 = vmatmul.f32.gmra.mxu0 %v258
      %v291 = vpop.f32.mrf.mxu0
      %v292 = vadd.f32 0.0, %v291
      %293 = vmatmul.f32.gmra.mxu0 %v261
      %v294 = vpop.f32.mrf.mxu0
      %v295 = vadd.f32 0.0, %v294
      %296 = vmatmul.f32.gmra.mxu0 %v264
      %v297 = vpop.f32.mrf.mxu0
      %v298 = vadd.f32 0.0, %v297
      %299 = vmatmul.f32.gmra.mxu0 %v267
      %v300 = vpop.f32.mrf.mxu0
      %v301 = vadd.f32 0.0, %v300
      %302 = vdwg.mxu0
      %303 = vmatpush.msra.mxu0 0.0
      %304 = vmatpush.msra.mxu0 0.0
      %305 = vmatpush.msra.mxu0 0.0
      %306 = vmatpush.msra.mxu0 0.0
      %307 = vmatpush.msra.mxu0 0.0
      %308 = vmatpush.msra.mxu0 0.0
      %309 = vmatpush.msra.mxu0 0.0
      %310 = vmatpush.msra.mxu0 0.0
      %311 = vmatpush.msra.mxu0 0.0
      %312 = vmatpush.msra.mxu0 0.0
      %313 = vmatpush.msra.mxu0 0.0
      %314 = vmatpush.msra.mxu0 0.0
      %315 = vmatpush.msra.mxu0 0.0
      %316 = vmatpush.msra.mxu0 0.0
      %317 = vmatpush.msra.mxu0 0.0
      %318 = vmatpush.msra.mxu0 %v272
      %319 = vmatmul.f32.gmra.mxu0 %v258
      %v320 = vpop.f32.mrf.mxu0
      %v321 = vadd.f32 0.0, %v320
      %322 = vmatmul.f32.gmra.mxu0 %v261
      %v323 = vpop.f32.mrf.mxu0
      %v324 = vadd.f32 0.0, %v323
      %325 = vmatmul.f32.gmra.mxu0 %v264
      %v326 = vpop.f32.mrf.mxu0
      %v327 = vadd.f32 0.0, %v326
      %328 = vmatmul.f32.gmra.mxu0 %v267
      %v329 = vpop.f32.mrf.mxu0
      %v330 = vadd.f32 0.0, %v329
      %331 = vdwg.mxu0
      %332 = vst [vmem:[%s230] sm:$0xff] %v292
      %333 = vst [vmem:[%s230 + $0x8] sm:$0xff] %v321
      %334 = vst [vmem:[%s230 + $0x10] sm:$0xff] %v295
      %335 = vst [vmem:[%s230 + $0x18] sm:$0xff] %v324
      %336 = vst [vmem:[%s230 + $0x20] sm:$0xff] %v298
      %337 = vst [vmem:[%s230 + $0x28] sm:$0xff] %v327
      %338 = vst [vmem:[%s230 + $0x30] sm:$0xff] %v301
      %339 = vst [vmem:[%s230 + $0x38] sm:$0xff] %v330
      %v340 = vld [vmem:[%s3] sm:$0xff]
      %v341 = vld [vmem:[%s3 + $0x8] sm:$0xff]
      %v342 = vld [vmem:[%s3 + $0x10] sm:$0xff]
      %v343 = vld [vmem:[%s3 + $0x18] sm:$0xff]
      %v344 = vadd.f32 %v292, %v321
      %345 = vadd.xlane.f32.xlu0 %v344
      %v346 = vpop.xlane.xlu0 %345
      %v347 = vadd.f32 %v295, %v324
      %348 = vadd.xlane.f32.xlu0 %v347
      %v349 = vpop.xlane.xlu0 %348
      %v350 = vadd.f32 %v298, %v327
      %351 = vadd.xlane.f32.xlu0 %v350
      %v352 = vpop.xlane.xlu0 %351
      %v353 = vadd.f32 %v301, %v330
      %354 = vadd.xlane.f32.xlu0 %v353
      %v355 = vpop.xlane.xlu0 %354
      %v356 = vadd.f32 %v340, %v346
      %v357 = vadd.f32 %v341, %v349
      %v358 = vadd.f32 %v342, %v352
      %v359 = vadd.f32 %v343, %v355
      %vm360 = vcmask 7168
      %361 = vst.msk [vmem:[%s3] sm:$0xff] %vm360, %v356
      %362 = vst.msk [vmem:[%s3 + $0x8] sm:$0xff] %vm360, %v357
      %363 = vst.msk [vmem:[%s3 + $0x10] sm:$0xff] %vm360, %v358
      %364 = vst.msk [vmem:[%s3 + $0x18] sm:$0xff] %vm360, %v359
      %v365 = vld [vmem:[%s4] sm:$0xff]
      %v366 = vld [vmem:[%s4 + $0x8] sm:$0xff]
      %v367 = vld [vmem:[%s4 + $0x10] sm:$0xff]
      %v368 = vld [vmem:[%s4 + $0x18] sm:$0xff]
      %v369 = vmul.f32 %v292, %v292
      %v370 = vmul.f32 %v321, %v321
      %v371 = vmul.f32 %v295, %v295
      %v372 = vmul.f32 %v324, %v324
      %v373 = vmul.f32 %v298, %v298
      %v374 = vmul.f32 %v327, %v327
      %v375 = vmul.f32 %v301, %v301
      %v376 = vmul.f32 %v330, %v330
      %v377 = vadd.f32 %v369, %v370
      %378 = vadd.xlane.f32.xlu0 %v377
      %v379 = vpop.xlane.xlu0 %378
      %v380 = vadd.f32 %v371, %v372
      %381 = vadd.xlane.f32.xlu0 %v380
      %v382 = vpop.xlane.xlu0 %381
      %v383 = vadd.f32 %v373, %v374
      %384 = vadd.xlane.f32.xlu0 %v383
      %v385 = vpop.xlane.xlu0 %384
      %v386 = vadd.f32 %v375, %v376
      %387 = vadd.xlane.f32.xlu0 %v386
      %v388 = vpop.xlane.xlu0 %387
      %v389 = vadd.f32 %v365, %v379
      %v390 = vadd.f32 %v366, %v382
      %v391 = vadd.f32 %v367, %v385
      %v392 = vadd.f32 %v368, %v388
      %393 = vst.msk [vmem:[%s4] sm:$0xff] %vm360, %v389
      %394 = vst.msk [vmem:[%s4 + $0x8] sm:$0xff] %vm360, %v390
      %395 = vst.msk [vmem:[%s4 + $0x10] sm:$0xff] %vm360, %v391
      %396 = vst.msk [vmem:[%s4 + $0x18] sm:$0xff] %vm360, %v392
      %s397 = smul.u32 2, %s21
      %p398 = scmp.lt.s32.totalorder %s20, 1
      %s399 = scalar_select %p398, %s20, 1
      %p400 = scmp.lt.s32.totalorder %s397, 1
      %s401 = scalar_select %p400, %s397, 1
      %s402 = smul.addr %s399, 8
      %s403 = sadd.s32 %s401, %s402
      %s404 = smul.addr %s403, 8
      %s405 = scalar_lea.vmem %s2, %s404
      // Predicated region
      $region33: #{projection_conv_forward.3} parent=27 // pred_check
        %p406 = pneg %p97
      $region34: #{projection_conv_forward.3} parent=27 // pred_check_branch
        %408 = sbr.rel (%p406) target = $region36
      $region35: #{projection_conv_forward.3} parent=27 // pred_region
        %s409 = smul.u32 2, %s21
      $region36: #{projection_conv_forward.3} parent=27 // pred_fallthru
        _
      // Predicated region
      $region37: #{projection_conv_forward.3} parent=27 // pred_check
        %p410 = pneg %p118
      $region38: #{projection_conv_forward.3} parent=27 // pred_check_branch
        %412 = sbr.rel (%p410) target = $region40
      $region39: #{projection_conv_forward.3} parent=27 // pred_region
        _
      $region40: #{projection_conv_forward.3} parent=27 // pred_fallthru
        _
      // Predicated region
      $region41: #{projection_conv_forward.3} parent=27 // pred_check
        %p413 = pneg %p139
      $region42: #{projection_conv_forward.3} parent=27 // pred_check_branch
        %415 = sbr.rel (%p413) target = $region44
      $region43: #{projection_conv_forward.3} parent=27 // pred_region
        _
      $region44: #{projection_conv_forward.3} parent=27 // pred_fallthru
        _
      // Predicated region
      $region45: #{projection_conv_forward.3} parent=27 // pred_check
        %p416 = pneg %p118
      $region46: #{projection_conv_forward.3} parent=27 // pred_check_branch
        %418 = sbr.rel (%p416) target = $region48
      $region47: #{projection_conv_forward.3} parent=27 // pred_region
        _
      $region48: #{projection_conv_forward.3} parent=27 // pred_fallthru
        _
      // Predicated region
      $region49: #{projection_conv_forward.3} parent=27 // pred_check
        %p419 = pneg %p139
      $region50: #{projection_conv_forward.3} parent=27 // pred_check_branch
        %421 = sbr.rel (%p419) target = $region52
      $region51: #{projection_conv_forward.3} parent=27 // pred_region
        _
      $region52: #{projection_conv_forward.3} parent=27 // pred_fallthru
        _
    $region28: #{projection_conv_forward.3} parent=5 // pred_fallthru
      _
    %p422 = scmp.le.s32.totalorder 2, %s11
    // Predicated region
    $region53: #{projection_conv_forward.3} parent=5 // pred_check
      %p423 = pneg %p422
    $region54: #{projection_conv_forward.3} parent=5 // pred_check_branch
      %425 = sbr.rel (%p423) target = $region56
    $region55: #{projection_conv_forward.3} parent=5 // pred_region
      %s426 = ssub.s32 %s11, 2
      // Predicated region
      $region57: #{projection_conv_forward.3} parent=55 // pred_check
        %p427 = pneg %p103
      $region58: #{projection_conv_forward.3} parent=55 // pred_check_branch
        %429 = sbr.rel (%p427) target = $region60
      $region59: #{projection_conv_forward.3} parent=55 // pred_region
        %s430 = smul.u32 2, %s23
        %p431 = scmp.lt.s32.totalorder %s22, 1
        %s432 = scalar_select %p431, %s22, 1
        %p433 = scmp.lt.s32.totalorder %s430, 1
        %s434 = scalar_select %p433, %s430, 1
        %s435 = smul.addr %s432, 8
        %s436 = sadd.s32 %s434, %s435
        %s437 = smul.addr %s436, 8
        %s438 = scalar_lea.vmem %s2, %s437
      $region60: #{projection_conv_forward.3} parent=55 // pred_fallthru
        _
    $region56: #{projection_conv_forward.3} parent=5 // pred_fallthru
      _
  $region6: #{projection_conv_forward.3} parent=0 // loop_footer
    %s15 = sadd.s32 1, %s11
  $region7: #{projection_conv_forward.3} parent=0 // loop_footer_branch
    %10 = sbr.rel target = $region3
  $region8: #{projection_conv_forward.3} parent=0 // loop_exit
    _

</llo_original>
